<compile_context>
chip_gen: v7x
topology: tpu7x:2x2x1
jax: 0.10.0
libtpu: 0.0.40
codegen_flags: <defaults>
</compile_context>

<pallas_src>
import functools

import jax
import jax.numpy as jnp
from jax import lax
from jax.experimental import pallas as pl
from jax.experimental.pallas import tpu as pltpu

BN_EPS = 1e-5


def cvr_kernel(H, W, n_valid,
               fa_ref, fv_ref, row_ref, col_ref,
               wq_ref, bq_ref, wkv_ref, bkv_ref, wf_ref, bf_ref,
               gamma_ref, beta_ref,
               out_ref, patch_ref):
    C, M = fa_ref.shape            # M is the (possibly lane-padded) pixel count

    # Per-pixel row / column indices (precomputed on host; -1 on padded lanes).
    row = row_ref[...]             # (1, M) int32
    col = col_ref[...]             # (1, M) int32
    row_ge1 = row >= 1             # source row i-1 is in-bounds
    row_leH = row <= H - 2         # source row i+1 is in-bounds
    col_ge1 = col >= 1             # source col j-1 is in-bounds
    col_leW = col <= W - 2         # source col j+1 is in-bounds
    valid = (row >= 0).astype(jnp.float32)   # (1, M): 1.0 on real pixels, 0.0 on padding
    inv_n = jnp.float32(1.0 / n_valid)

    def build_patches(x):
        # x: (C, M) channels-major flattened image(s).  Writes the 9 shifted taps into
        # patch_ref as a (9*C, M) im2col matrix; rows [tap*C, (tap+1)*C) hold x shifted
        # by (ry, rx), zeroed where the true conv would read zero padding or would cross
        # a row / image boundary.  Shift is a lane rotation on the XLU; wrapped lanes are
        # always covered by a mask, so the wrap never leaks into valid outputs.
        for ry in (-1, 0, 1):
            for rx in (-1, 0, 1):
                off = ry * W + rx                        # flat offset of the source pixel
                if off == 0:
                    shifted = x
                else:
                    # shifted[:, m] = x[:, (m + off) % M]
                    shifted = pltpu.roll(x, (-off) % M, 1)
                mask = None
                if ry == -1:
                    mask = row_ge1
                elif ry == 1:
                    mask = row_leH
                if rx == -1:
                    mask = col_ge1 if mask is None else jnp.logical_and(mask, col_ge1)
                elif rx == 1:
                    mask = col_leW if mask is None else jnp.logical_and(mask, col_leW)
                if mask is not None:
                    shifted = jnp.where(mask, shifted, 0.0)
                tap = (ry + 1) * 3 + (rx + 1)            # row-major over (dy, dx)
                patch_ref[tap * C:(tap + 1) * C, :] = shifted

    # ---- query branch: conv3x3 -> ReLU -> BatchNorm2d (batch statistics) ----
    build_patches(fa_ref[...])
    q = jnp.dot(wq_ref[...], patch_ref[...], preferred_element_type=jnp.float32)
    q = jnp.maximum(q + bq_ref[...], 0.0)                            # (C, M)
    mu = jnp.sum(q * valid, axis=1, keepdims=True) * inv_n           # (C, 1) batch mean
    centered = (q - mu) * valid
    var = jnp.sum(centered * centered, axis=1, keepdims=True) * inv_n  # biased variance
    a_query = gamma_ref[...] * (q - mu) * lax.rsqrt(var + BN_EPS) + beta_ref[...]

    # ---- key / value branches: one shared im2col + one fused matmul ----
    build_patches(fv_ref[...])
    kv = jnp.dot(wkv_ref[...], patch_ref[...], preferred_element_type=jnp.float32)
    kv = jnp.maximum(kv + bkv_ref[...], 0.0)                         # (2C, M)
    v_key = kv[:C, :]
    v_value = kv[C:, :]

    # ---- cross-modal product + fusion conv -> ReLU ----
    qk = a_query * v_key                                             # (C, M)
    build_patches(qk)
    fused = jnp.dot(wf_ref[...], patch_ref[...], preferred_element_type=jnp.float32)
    fused = jnp.maximum(fused + bf_ref[...], 0.0)

    # ---- refinement: value * fused (lane-dense (C, M) store) ----
    out_ref[...] = v_value * fused


def cross_modal_volume_refinement(Fv, Fa, params):
    """Fv, Fa: (N, H, W, C) float32 NHWC.  Returns (N, H, W, C)."""
    N, H, W, C = Fv.shape
    M = N * H * W
    M_pad = ((M + 127) // 128) * 128      # lane-dense padding of the pixel axis
    pad = M_pad - M
    (wq, bq, wk, bk, wv, bv, wf, bf, gamma, beta) = params

    # --- lane-dense channels-major packing: (N, H, W, C) -> (C, M_pad) ---
    def pack_x(x):
        x = jnp.transpose(x, (3, 0, 1, 2)).reshape(C, M)
        return jnp.pad(x, ((0, 0), (0, pad))) if pad else x

    fa_cm = pack_x(Fa)
    fv_cm = pack_x(Fv)

    # --- im2col weight packing: (9, Cin, Cout) -> (Cout, 9*Cin) ---
    def pack_w(w9):
        return jnp.transpose(w9, (2, 0, 1)).reshape(C, 9 * C)

    def pack_b(b):
        return b.reshape(C, 1)

    wq_r, wf_r = pack_w(wq), pack_w(wf)
    wkv_r = jnp.concatenate([pack_w(wk), pack_w(wv)], axis=0)        # (2C, 9C)
    bq_r, bf_r = pack_b(bq), pack_b(bf)
    bkv_r = jnp.concatenate([pack_b(bk), pack_b(bv)], axis=0)        # (2C, 1)
    gamma_r, beta_r = pack_b(gamma), pack_b(beta)

    # Per-pixel row / column indices (int32, -1 on padded lanes) for in-kernel masks.
    m_idx = jnp.arange(M, dtype=jnp.int32)
    col_idx = m_idx % W
    row_idx = (m_idx // W) % H
    if pad:
        neg = -jnp.ones((pad,), jnp.int32)
        col_idx = jnp.concatenate([col_idx, neg])
        row_idx = jnp.concatenate([row_idx, neg])
    col_idx = col_idx.reshape(1, M_pad)
    row_idx = row_idx.reshape(1, M_pad)

    # Actual per-call VMEM footprint (bytes) -> explicit scoped-VMEM limit with margin.
    footprint = 4 * (9 * C * M_pad        # im2col scratch
                     + 3 * C * M_pad      # fa, fv, out
                     + 2 * M_pad          # row / col indices
                     + 4 * C * 9 * C      # packed conv weights
                     + 6 * C)             # biases + BN affine
    vmem_limit = min(128 * 1024 * 1024, max(4 * 1024 * 1024, 4 * footprint))

    cost = pl.CostEstimate(
        flops=2 * M_pad * (9 * C) * (4 * C) + 12 * M_pad * C,   # 3 im2col matmuls + elementwise
        transcendentals=C,                                      # per-channel rsqrt
        bytes_accessed=4 * (3 * C * M_pad + 2 * M_pad + 4 * C * 9 * C + 6 * C),
    )

    out_cm = pl.pallas_call(
        functools.partial(cvr_kernel, H, W, M),
        out_shape=jax.ShapeDtypeStruct((C, M_pad), jnp.float32),
        in_specs=[pl.BlockSpec(memory_space=pltpu.MemorySpace.VMEM)] * 12,
        out_specs=pl.BlockSpec(memory_space=pltpu.MemorySpace.VMEM),
        scratch_shapes=[pltpu.VMEM((9 * C, M_pad), jnp.float32)],
        compiler_params=pltpu.CompilerParams(vmem_limit_bytes=vmem_limit),
        cost_estimate=cost,
    )(fa_cm, fv_cm, row_idx, col_idx,
      wq_r, bq_r, wkv_r, bkv_r, wf_r, bf_r, gamma_r, beta_r)

    # (C, M_pad) -> drop lane padding -> (N, H, W, C)
    out_cm = out_cm[:, :M]
    return jnp.transpose(out_cm.reshape(C, N, H, W), (1, 2, 3, 0))


# ---------------- pure-JAX reference (for correctness check) ----------------
def _ref_conv3x3(x, w9, b):
    Cin = x.shape[-1]
    Cout = w9.shape[-1]
    w = w9.reshape(3, 3, Cin, Cout)  # HWIO
    y = lax.conv_general_dilated(
        x, w, window_strides=(1, 1), padding="SAME",
        dimension_numbers=("NHWC", "HWIO", "NHWC"),
        precision=lax.Precision.HIGHEST)
    return y + b.reshape(1, 1, 1, Cout)


def ref_forward(Fv, Fa, params):
    (wq, bq, wk, bk, wv, bv, wf, bf, gamma, beta) = params
    C = Fv.shape[-1]
    q = jnp.maximum(_ref_conv3x3(Fa, wq, bq), 0.0)
    mu = jnp.mean(q, axis=(0, 1, 2), keepdims=True)
    var = jnp.mean((q - mu) ** 2, axis=(0, 1, 2), keepdims=True)
    a_query = (gamma.reshape(1, 1, 1, C) * (q - mu) * lax.rsqrt(var + BN_EPS)
               + beta.reshape(1, 1, 1, C))
    v_key = jnp.maximum(_ref_conv3x3(Fv, wk, bk), 0.0)
    v_value = jnp.maximum(_ref_conv3x3(Fv, wv, bv), 0.0)
    qk = a_query * v_key
    fused = jnp.maximum(_ref_conv3x3(qk, wf, bf), 0.0)
    return v_value * fused


if __name__ == "__main__":
    N, H, W, C = 2, 16, 16, 8   # input_channels == out_channels == 8; N*H*W = 512 lanes

    key = jax.random.PRNGKey(0)
    ks = jax.random.split(key, 12)

    def conv_w(k):
        return jax.random.normal(k, (9, C, C), jnp.float32) * 0.1

    def bias(k):
        return jax.random.normal(k, (1, C), jnp.float32) * 0.1

    wq, bq = conv_w(ks[0]), bias(ks[1])
    wk, bk = conv_w(ks[2]), bias(ks[3])
    wv, bv = conv_w(ks[4]), bias(ks[5])
    wf, bf = conv_w(ks[6]), bias(ks[7])
    gamma = 1.0 + 0.1 * jax.random.normal(ks[8], (1, C), jnp.float32)
    beta = 0.1 * jax.random.normal(ks[9], (1, C), jnp.float32)
    params = (wq, bq, wk, bk, wv, bv, wf, bf, gamma, beta)

    Fv = jax.random.normal(ks[10], (N, H, W, C), jnp.float32)
    Fa = jax.random.normal(ks[11], (N, H, W, C), jnp.float32)

    out = jax.block_until_ready(cross_modal_volume_refinement(Fv, Fa, params))
    ref = jax.block_until_ready(ref_forward(Fv, Fa, params))

    assert out.shape == (N, H, W, C)
    max_err = jnp.max(jnp.abs(out - ref))
    assert jnp.allclose(out, ref, rtol=2e-3, atol=2e-3), f"max abs err {max_err}"

    print("KERNEL_OK")
</pallas_src>

<mosaic_0001>
module attributes {stable_mosaic.version = 11 : i64} {
  func.func @cvr_kernel(%arg0: memref<8x512xf32, #tpu.memory_space<vmem>>, %arg1: memref<8x512xf32, #tpu.memory_space<vmem>>, %arg2: memref<1x512xi32, #tpu.memory_space<vmem>>, %arg3: memref<1x512xi32, #tpu.memory_space<vmem>>, %arg4: memref<8x72xf32, #tpu.memory_space<vmem>>, %arg5: memref<8x1xf32, #tpu.memory_space<vmem>>, %arg6: memref<16x72xf32, #tpu.memory_space<vmem>>, %arg7: memref<16x1xf32, #tpu.memory_space<vmem>>, %arg8: memref<8x72xf32, #tpu.memory_space<vmem>>, %arg9: memref<8x1xf32, #tpu.memory_space<vmem>>, %arg10: memref<8x1xf32, #tpu.memory_space<vmem>>, %arg11: memref<8x1xf32, #tpu.memory_space<vmem>>, %arg12: memref<8x512xf32, #tpu.memory_space<vmem>>, %arg13: memref<72x512xf32, #tpu.memory_space<vmem>>) attributes {dimension_semantics = [], scalar_prefetch = 0 : i64, scratch_operands = 1 : i64, tpu.core_type = #tpu.core_type<tc>} {
    %c0 = arith.constant 0 : index
    %c0_0 = arith.constant 0 : index
    %0 = vector.load %arg2[%c0, %c0_0] : memref<1x512xi32, #tpu.memory_space<vmem>>, vector<1x512xi32>
    %c0_1 = arith.constant 0 : index
    %c0_2 = arith.constant 0 : index
    %1 = vector.load %arg3[%c0_1, %c0_2] : memref<1x512xi32, #tpu.memory_space<vmem>>, vector<1x512xi32>
    %c1_i32 = arith.constant 1 : i32
    %2 = vector.broadcast %c1_i32 : i32 to vector<1x512xi32>
    %3 = arith.cmpi sge, %0, %2 : vector<1x512xi32>
    %c14_i32 = arith.constant 14 : i32
    %4 = vector.broadcast %c14_i32 : i32 to vector<1x512xi32>
    %5 = arith.cmpi sle, %0, %4 : vector<1x512xi32>
    %c1_i32_3 = arith.constant 1 : i32
    %6 = vector.broadcast %c1_i32_3 : i32 to vector<1x512xi32>
    %7 = arith.cmpi sge, %1, %6 : vector<1x512xi32>
    %c14_i32_4 = arith.constant 14 : i32
    %8 = vector.broadcast %c14_i32_4 : i32 to vector<1x512xi32>
    %9 = arith.cmpi sle, %1, %8 : vector<1x512xi32>
    %c0_i32 = arith.constant 0 : i32
    %10 = vector.broadcast %c0_i32 : i32 to vector<1x512xi32>
    %11 = arith.cmpi sge, %0, %10 : vector<1x512xi32>
    %12 = arith.extui %11 : vector<1x512xi1> to vector<1x512xi32>
    %13 = arith.sitofp %12 : vector<1x512xi32> to vector<1x512xf32>
    %c0_5 = arith.constant 0 : index
    %c0_6 = arith.constant 0 : index
    %14 = vector.load %arg0[%c0_5, %c0_6] : memref<8x512xf32, #tpu.memory_space<vmem>>, vector<8x512xf32>
    %c17_i32 = arith.constant 17 : i32
    %15 = tpu.dynamic_rotate %14 by %c17_i32 dim 1 : vector<8x512xf32>, i32 -> vector<8x512xf32>
    %16 = arith.andi %3, %7 : vector<1x512xi1>
    %cst = arith.constant 0.000000e+00 : f32
    %17 = vector.shape_cast %16 : vector<1x512xi1> to vector<1x512xi1>
    %18 = vector.broadcast %17 : vector<1x512xi1> to vector<8x512xi1>
    %19 = vector.broadcast %cst : f32 to vector<8x512xf32>
    %20 = arith.select %18, %15, %19 : vector<8x512xi1>, vector<8x512xf32>
    %c0_7 = arith.constant 0 : index
    %c0_8 = arith.constant 0 : index
    %21 = vector.load %arg13[%c0_7, %c0_8] : memref<72x512xf32, #tpu.memory_space<vmem>>, vector<8x512xf32>
    tpu.vector_store %arg13[%c0_7, %c0_8], %20 {strides = array<i32>} : memref<72x512xf32, #tpu.memory_space<vmem>>, vector<8x512xf32>,
    %c16_i32 = arith.constant 16 : i32
    %22 = tpu.dynamic_rotate %14 by %c16_i32 dim 1 : vector<8x512xf32>, i32 -> vector<8x512xf32>
    %cst_9 = arith.constant 0.000000e+00 : f32
    %23 = vector.shape_cast %3 : vector<1x512xi1> to vector<1x512xi1>
    %24 = vector.broadcast %23 : vector<1x512xi1> to vector<8x512xi1>
    %25 = vector.broadcast %cst_9 : f32 to vector<8x512xf32>
    %26 = arith.select %24, %22, %25 : vector<8x512xi1>, vector<8x512xf32>
    %c8 = arith.constant 8 : index
    %c0_10 = arith.constant 0 : index
    %27 = vector.load %arg13[%c8, %c0_10] : memref<72x512xf32, #tpu.memory_space<vmem>>, vector<8x512xf32>
    tpu.vector_store %arg13[%c8, %c0_10], %26 {strides = array<i32>} : memref<72x512xf32, #tpu.memory_space<vmem>>, vector<8x512xf32>,
    %c15_i32 = arith.constant 15 : i32
    %28 = tpu.dynamic_rotate %14 by %c15_i32 dim 1 : vector<8x512xf32>, i32 -> vector<8x512xf32>
    %29 = arith.andi %3, %9 : vector<1x512xi1>
    %cst_11 = arith.constant 0.000000e+00 : f32
    %30 = vector.shape_cast %29 : vector<1x512xi1> to vector<1x512xi1>
    %31 = vector.broadcast %30 : vector<1x512xi1> to vector<8x512xi1>
    %32 = vector.broadcast %cst_11 : f32 to vector<8x512xf32>
    %33 = arith.select %31, %28, %32 : vector<8x512xi1>, vector<8x512xf32>
    %c16 = arith.constant 16 : index
    %c0_12 = arith.constant 0 : index
    %34 = vector.load %arg13[%c16, %c0_12] : memref<72x512xf32, #tpu.memory_space<vmem>>, vector<8x512xf32>
    tpu.vector_store %arg13[%c16, %c0_12], %33 {strides = array<i32>} : memref<72x512xf32, #tpu.memory_space<vmem>>, vector<8x512xf32>,
    %c1_i32_13 = arith.constant 1 : i32
    %35 = tpu.dynamic_rotate %14 by %c1_i32_13 dim 1 : vector<8x512xf32>, i32 -> vector<8x512xf32>
    %cst_14 = arith.constant 0.000000e+00 : f32
    %36 = vector.shape_cast %7 : vector<1x512xi1> to vector<1x512xi1>
    %37 = vector.broadcast %36 : vector<1x512xi1> to vector<8x512xi1>
    %38 = vector.broadcast %cst_14 : f32 to vector<8x512xf32>
    %39 = arith.select %37, %35, %38 : vector<8x512xi1>, vector<8x512xf32>
    %c24 = arith.constant 24 : index
    %c0_15 = arith.constant 0 : index
    %40 = vector.load %arg13[%c24, %c0_15] : memref<72x512xf32, #tpu.memory_space<vmem>>, vector<8x512xf32>
    tpu.vector_store %arg13[%c24, %c0_15], %39 {strides = array<i32>} : memref<72x512xf32, #tpu.memory_space<vmem>>, vector<8x512xf32>,
    %c32 = arith.constant 32 : index
    %c0_16 = arith.constant 0 : index
    %41 = vector.load %arg13[%c32, %c0_16] : memref<72x512xf32, #tpu.memory_space<vmem>>, vector<8x512xf32>
    tpu.vector_store %arg13[%c32, %c0_16], %14 {strides = array<i32>} : memref<72x512xf32, #tpu.memory_space<vmem>>, vector<8x512xf32>,
    %c511_i32 = arith.constant 511 : i32
    %42 = tpu.dynamic_rotate %14 by %c511_i32 dim 1 : vector<8x512xf32>, i32 -> vector<8x512xf32>
    %cst_17 = arith.constant 0.000000e+00 : f32
    %43 = vector.shape_cast %9 : vector<1x512xi1> to vector<1x512xi1>
    %44 = vector.broadcast %43 : vector<1x512xi1> to vector<8x512xi1>
    %45 = vector.broadcast %cst_17 : f32 to vector<8x512xf32>
    %46 = arith.select %44, %42, %45 : vector<8x512xi1>, vector<8x512xf32>
    %c40 = arith.constant 40 : index
    %c0_18 = arith.constant 0 : index
    %47 = vector.load %arg13[%c40, %c0_18] : memref<72x512xf32, #tpu.memory_space<vmem>>, vector<8x512xf32>
    tpu.vector_store %arg13[%c40, %c0_18], %46 {strides = array<i32>} : memref<72x512xf32, #tpu.memory_space<vmem>>, vector<8x512xf32>,
    %c497_i32 = arith.constant 497 : i32
    %48 = tpu.dynamic_rotate %14 by %c497_i32 dim 1 : vector<8x512xf32>, i32 -> vector<8x512xf32>
    %49 = arith.andi %5, %7 : vector<1x512xi1>
    %cst_19 = arith.constant 0.000000e+00 : f32
    %50 = vector.shape_cast %49 : vector<1x512xi1> to vector<1x512xi1>
    %51 = vector.broadcast %50 : vector<1x512xi1> to vector<8x512xi1>
    %52 = vector.broadcast %cst_19 : f32 to vector<8x512xf32>
    %53 = arith.select %51, %48, %52 : vector<8x512xi1>, vector<8x512xf32>
    %c48 = arith.constant 48 : index
    %c0_20 = arith.constant 0 : index
    %54 = vector.load %arg13[%c48, %c0_20] : memref<72x512xf32, #tpu.memory_space<vmem>>, vector<8x512xf32>
    tpu.vector_store %arg13[%c48, %c0_20], %53 {strides = array<i32>} : memref<72x512xf32, #tpu.memory_space<vmem>>, vector<8x512xf32>,
    %c496_i32 = arith.constant 496 : i32
    %55 = tpu.dynamic_rotate %14 by %c496_i32 dim 1 : vector<8x512xf32>, i32 -> vector<8x512xf32>
    %cst_21 = arith.constant 0.000000e+00 : f32
    %56 = vector.shape_cast %5 : vector<1x512xi1> to vector<1x512xi1>
    %57 = vector.broadcast %56 : vector<1x512xi1> to vector<8x512xi1>
    %58 = vector.broadcast %cst_21 : f32 to vector<8x512xf32>
    %59 = arith.select %57, %55, %58 : vector<8x512xi1>, vector<8x512xf32>
    %c56 = arith.constant 56 : index
    %c0_22 = arith.constant 0 : index
    %60 = vector.load %arg13[%c56, %c0_22] : memref<72x512xf32, #tpu.memory_space<vmem>>, vector<8x512xf32>
    tpu.vector_store %arg13[%c56, %c0_22], %59 {strides = array<i32>} : memref<72x512xf32, #tpu.memory_space<vmem>>, vector<8x512xf32>,
    %c495_i32 = arith.constant 495 : i32
    %61 = tpu.dynamic_rotate %14 by %c495_i32 dim 1 : vector<8x512xf32>, i32 -> vector<8x512xf32>
    %62 = arith.andi %5, %9 : vector<1x512xi1>
    %cst_23 = arith.constant 0.000000e+00 : f32
    %63 = vector.shape_cast %62 : vector<1x512xi1> to vector<1x512xi1>
    %64 = vector.broadcast %63 : vector<1x512xi1> to vector<8x512xi1>
    %65 = vector.broadcast %cst_23 : f32 to vector<8x512xf32>
    %66 = arith.select %64, %61, %65 : vector<8x512xi1>, vector<8x512xf32>
    %c64 = arith.constant 64 : index
    %c0_24 = arith.constant 0 : index
    %67 = vector.load %arg13[%c64, %c0_24] : memref<72x512xf32, #tpu.memory_space<vmem>>, vector<8x512xf32>
    tpu.vector_store %arg13[%c64, %c0_24], %66 {strides = array<i32>} : memref<72x512xf32, #tpu.memory_space<vmem>>, vector<8x512xf32>,
    %c0_25 = arith.constant 0 : index
    %c0_26 = arith.constant 0 : index
    %68 = vector.load %arg4[%c0_25, %c0_26] : memref<8x72xf32, #tpu.memory_space<vmem>>, vector<8x72xf32>
    %c0_27 = arith.constant 0 : index
    %c0_28 = arith.constant 0 : index
    %69 = vector.load %arg13[%c0_27, %c0_28] : memref<72x512xf32, #tpu.memory_space<vmem>>, vector<72x512xf32>
    %cst_29 = arith.constant dense<0.000000e+00> : vector<8x512xf32>
    %70 = tpu.matmul %68, %69, %cst_29 {dimension_numbers = #tpu.dot_dimension_numbers<[1], [0], [0], [1], [0, 0, 1, 1], [], []>} : vector<8x72xf32>, vector<72x512xf32>, vector<8x512xf32> -> vector<8x512xf32>
    %c0_30 = arith.constant 0 : index
    %c0_31 = arith.constant 0 : index
    %71 = vector.load %arg5[%c0_30, %c0_31] : memref<8x1xf32, #tpu.memory_space<vmem>>, vector<8x1xf32>
    %72 = vector.broadcast %71 : vector<8x1xf32> to vector<8x512xf32>
    %73 = arith.addf %70, %72 : vector<8x512xf32>
    %cst_32 = arith.constant 0.000000e+00 : f32
    %74 = vector.broadcast %cst_32 : f32 to vector<8x512xf32>
    %75 = arith.maximumf %73, %74 : vector<8x512xf32>
    %76 = vector.broadcast %13 : vector<1x512xf32> to vector<8x512xf32>
    %77 = arith.mulf %75, %76 : vector<8x512xf32>
    %cst_33 = arith.constant dense<0.000000e+00> : vector<8xf32>
    %78 = vector.multi_reduction <add>, %77, %cst_33 [1] : vector<8x512xf32> to vector<8xf32>
    %79 = vector.shape_cast %78 : vector<8xf32> to vector<8x1xf32>
    %cst_34 = arith.constant 0.001953125 : f32
    %80 = vector.broadcast %cst_34 : f32 to vector<8x1xf32>
    %81 = arith.mulf %79, %80 : vector<8x1xf32>
    %82 = vector.broadcast %81 : vector<8x1xf32> to vector<8x512xf32>
    %83 = arith.subf %75, %82 : vector<8x512xf32>
    %84 = vector.broadcast %13 : vector<1x512xf32> to vector<8x512xf32>
    %85 = arith.mulf %83, %84 : vector<8x512xf32>
    %86 = arith.mulf %85, %85 : vector<8x512xf32>
    %cst_35 = arith.constant dense<0.000000e+00> : vector<8xf32>
    %87 = vector.multi_reduction <add>, %86, %cst_35 [1] : vector<8x512xf32> to vector<8xf32>
    %88 = vector.shape_cast %87 : vector<8xf32> to vector<8x1xf32>
    %cst_36 = arith.constant 0.001953125 : f32
    %89 = vector.broadcast %cst_36 : f32 to vector<8x1xf32>
    %90 = arith.mulf %88, %89 : vector<8x1xf32>
    %c0_37 = arith.constant 0 : index
    %c0_38 = arith.constant 0 : index
    %91 = vector.load %arg10[%c0_37, %c0_38] : memref<8x1xf32, #tpu.memory_space<vmem>>, vector<8x1xf32>
    %92 = vector.broadcast %81 : vector<8x1xf32> to vector<8x512xf32>
    %93 = arith.subf %75, %92 : vector<8x512xf32>
    %94 = vector.broadcast %91 : vector<8x1xf32> to vector<8x512xf32>
    %95 = arith.mulf %94, %93 : vector<8x512xf32>
    %cst_39 = arith.constant 9.99999974E-6 : f32
    %96 = vector.broadcast %cst_39 : f32 to vector<8x1xf32>
    %97 = arith.addf %90, %96 : vector<8x1xf32>
    %98 = math.rsqrt %97 : vector<8x1xf32>
    %99 = vector.broadcast %98 : vector<8x1xf32> to vector<8x512xf32>
    %100 = arith.mulf %95, %99 : vector<8x512xf32>
    %c0_40 = arith.constant 0 : index
    %c0_41 = arith.constant 0 : index
    %101 = vector.load %arg11[%c0_40, %c0_41] : memref<8x1xf32, #tpu.memory_space<vmem>>, vector<8x1xf32>
    %102 = vector.broadcast %101 : vector<8x1xf32> to vector<8x512xf32>
    %103 = arith.addf %100, %102 : vector<8x512xf32>
    %c0_42 = arith.constant 0 : index
    %c0_43 = arith.constant 0 : index
    %104 = vector.load %arg1[%c0_42, %c0_43] : memref<8x512xf32, #tpu.memory_space<vmem>>, vector<8x512xf32>
    %c17_i32_44 = arith.constant 17 : i32
    %105 = tpu.dynamic_rotate %104 by %c17_i32_44 dim 1 : vector<8x512xf32>, i32 -> vector<8x512xf32>
    %106 = arith.andi %3, %7 : vector<1x512xi1>
    %cst_45 = arith.constant 0.000000e+00 : f32
    %107 = vector.shape_cast %106 : vector<1x512xi1> to vector<1x512xi1>
    %108 = vector.broadcast %107 : vector<1x512xi1> to vector<8x512xi1>
    %109 = vector.broadcast %cst_45 : f32 to vector<8x512xf32>
    %110 = arith.select %108, %105, %109 : vector<8x512xi1>, vector<8x512xf32>
    %c0_46 = arith.constant 0 : index
    %c0_47 = arith.constant 0 : index
    %111 = vector.load %arg13[%c0_46, %c0_47] : memref<72x512xf32, #tpu.memory_space<vmem>>, vector<8x512xf32>
    tpu.vector_store %arg13[%c0_46, %c0_47], %110 {strides = array<i32>} : memref<72x512xf32, #tpu.memory_space<vmem>>, vector<8x512xf32>,
    %c16_i32_48 = arith.constant 16 : i32
    %112 = tpu.dynamic_rotate %104 by %c16_i32_48 dim 1 : vector<8x512xf32>, i32 -> vector<8x512xf32>
    %cst_49 = arith.constant 0.000000e+00 : f32
    %113 = vector.shape_cast %3 : vector<1x512xi1> to vector<1x512xi1>
    %114 = vector.broadcast %113 : vector<1x512xi1> to vector<8x512xi1>
    %115 = vector.broadcast %cst_49 : f32 to vector<8x512xf32>
    %116 = arith.select %114, %112, %115 : vector<8x512xi1>, vector<8x512xf32>
    %c8_50 = arith.constant 8 : index
    %c0_51 = arith.constant 0 : index
    %117 = vector.load %arg13[%c8_50, %c0_51] : memref<72x512xf32, #tpu.memory_space<vmem>>, vector<8x512xf32>
    tpu.vector_store %arg13[%c8_50, %c0_51], %116 {strides = array<i32>} : memref<72x512xf32, #tpu.memory_space<vmem>>, vector<8x512xf32>,
    %c15_i32_52 = arith.constant 15 : i32
    %118 = tpu.dynamic_rotate %104 by %c15_i32_52 dim 1 : vector<8x512xf32>, i32 -> vector<8x512xf32>
    %119 = arith.andi %3, %9 : vector<1x512xi1>
    %cst_53 = arith.constant 0.000000e+00 : f32
    %120 = vector.shape_cast %119 : vector<1x512xi1> to vector<1x512xi1>
    %121 = vector.broadcast %120 : vector<1x512xi1> to vector<8x512xi1>
    %122 = vector.broadcast %cst_53 : f32 to vector<8x512xf32>
    %123 = arith.select %121, %118, %122 : vector<8x512xi1>, vector<8x512xf32>
    %c16_54 = arith.constant 16 : index
    %c0_55 = arith.constant 0 : index
    %124 = vector.load %arg13[%c16_54, %c0_55] : memref<72x512xf32, #tpu.memory_space<vmem>>, vector<8x512xf32>
    tpu.vector_store %arg13[%c16_54, %c0_55], %123 {strides = array<i32>} : memref<72x512xf32, #tpu.memory_space<vmem>>, vector<8x512xf32>,
    %c1_i32_56 = arith.constant 1 : i32
    %125 = tpu.dynamic_rotate %104 by %c1_i32_56 dim 1 : vector<8x512xf32>, i32 -> vector<8x512xf32>
    %cst_57 = arith.constant 0.000000e+00 : f32
    %126 = vector.shape_cast %7 : vector<1x512xi1> to vector<1x512xi1>
    %127 = vector.broadcast %126 : vector<1x512xi1> to vector<8x512xi1>
    %128 = vector.broadcast %cst_57 : f32 to vector<8x512xf32>
    %129 = arith.select %127, %125, %128 : vector<8x512xi1>, vector<8x512xf32>
    %c24_58 = arith.constant 24 : index
    %c0_59 = arith.constant 0 : index
    %130 = vector.load %arg13[%c24_58, %c0_59] : memref<72x512xf32, #tpu.memory_space<vmem>>, vector<8x512xf32>
    tpu.vector_store %arg13[%c24_58, %c0_59], %129 {strides = array<i32>} : memref<72x512xf32, #tpu.memory_space<vmem>>, vector<8x512xf32>,
    %c32_60 = arith.constant 32 : index
    %c0_61 = arith.constant 0 : index
    %131 = vector.load %arg13[%c32_60, %c0_61] : memref<72x512xf32, #tpu.memory_space<vmem>>, vector<8x512xf32>
    tpu.vector_store %arg13[%c32_60, %c0_61], %104 {strides = array<i32>} : memref<72x512xf32, #tpu.memory_space<vmem>>, vector<8x512xf32>,
    %c511_i32_62 = arith.constant 511 : i32
    %132 = tpu.dynamic_rotate %104 by %c511_i32_62 dim 1 : vector<8x512xf32>, i32 -> vector<8x512xf32>
    %cst_63 = arith.constant 0.000000e+00 : f32
    %133 = vector.shape_cast %9 : vector<1x512xi1> to vector<1x512xi1>
    %134 = vector.broadcast %133 : vector<1x512xi1> to vector<8x512xi1>
    %135 = vector.broadcast %cst_63 : f32 to vector<8x512xf32>
    %136 = arith.select %134, %132, %135 : vector<8x512xi1>, vector<8x512xf32>
    %c40_64 = arith.constant 40 : index
    %c0_65 = arith.constant 0 : index
    %137 = vector.load %arg13[%c40_64, %c0_65] : memref<72x512xf32, #tpu.memory_space<vmem>>, vector<8x512xf32>
    tpu.vector_store %arg13[%c40_64, %c0_65], %136 {strides = array<i32>} : memref<72x512xf32, #tpu.memory_space<vmem>>, vector<8x512xf32>,
    %c497_i32_66 = arith.constant 497 : i32
    %138 = tpu.dynamic_rotate %104 by %c497_i32_66 dim 1 : vector<8x512xf32>, i32 -> vector<8x512xf32>
    %139 = arith.andi %5, %7 : vector<1x512xi1>
    %cst_67 = arith.constant 0.000000e+00 : f32
    %140 = vector.shape_cast %139 : vector<1x512xi1> to vector<1x512xi1>
    %141 = vector.broadcast %140 : vector<1x512xi1> to vector<8x512xi1>
    %142 = vector.broadcast %cst_67 : f32 to vector<8x512xf32>
    %143 = arith.select %141, %138, %142 : vector<8x512xi1>, vector<8x512xf32>
    %c48_68 = arith.constant 48 : index
    %c0_69 = arith.constant 0 : index
    %144 = vector.load %arg13[%c48_68, %c0_69] : memref<72x512xf32, #tpu.memory_space<vmem>>, vector<8x512xf32>
    tpu.vector_store %arg13[%c48_68, %c0_69], %143 {strides = array<i32>} : memref<72x512xf32, #tpu.memory_space<vmem>>, vector<8x512xf32>,
    %c496_i32_70 = arith.constant 496 : i32
    %145 = tpu.dynamic_rotate %104 by %c496_i32_70 dim 1 : vector<8x512xf32>, i32 -> vector<8x512xf32>
    %cst_71 = arith.constant 0.000000e+00 : f32
    %146 = vector.shape_cast %5 : vector<1x512xi1> to vector<1x512xi1>
    %147 = vector.broadcast %146 : vector<1x512xi1> to vector<8x512xi1>
    %148 = vector.broadcast %cst_71 : f32 to vector<8x512xf32>
    %149 = arith.select %147, %145, %148 : vector<8x512xi1>, vector<8x512xf32>
    %c56_72 = arith.constant 56 : index
    %c0_73 = arith.constant 0 : index
    %150 = vector.load %arg13[%c56_72, %c0_73] : memref<72x512xf32, #tpu.memory_space<vmem>>, vector<8x512xf32>
    tpu.vector_store %arg13[%c56_72, %c0_73], %149 {strides = array<i32>} : memref<72x512xf32, #tpu.memory_space<vmem>>, vector<8x512xf32>,
    %c495_i32_74 = arith.constant 495 : i32
    %151 = tpu.dynamic_rotate %104 by %c495_i32_74 dim 1 : vector<8x512xf32>, i32 -> vector<8x512xf32>
    %152 = arith.andi %5, %9 : vector<1x512xi1>
    %cst_75 = arith.constant 0.000000e+00 : f32
    %153 = vector.shape_cast %152 : vector<1x512xi1> to vector<1x512xi1>
    %154 = vector.broadcast %153 : vector<1x512xi1> to vector<8x512xi1>
    %155 = vector.broadcast %cst_75 : f32 to vector<8x512xf32>
    %156 = arith.select %154, %151, %155 : vector<8x512xi1>, vector<8x512xf32>
    %c64_76 = arith.constant 64 : index
    %c0_77 = arith.constant 0 : index
    %157 = vector.load %arg13[%c64_76, %c0_77] : memref<72x512xf32, #tpu.memory_space<vmem>>, vector<8x512xf32>
    tpu.vector_store %arg13[%c64_76, %c0_77], %156 {strides = array<i32>} : memref<72x512xf32, #tpu.memory_space<vmem>>, vector<8x512xf32>,
    %c0_78 = arith.constant 0 : index
    %c0_79 = arith.constant 0 : index
    %158 = vector.load %arg6[%c0_78, %c0_79] : memref<16x72xf32, #tpu.memory_space<vmem>>, vector<16x72xf32>
    %c0_80 = arith.constant 0 : index
    %c0_81 = arith.constant 0 : index
    %159 = vector.load %arg13[%c0_80, %c0_81] : memref<72x512xf32, #tpu.memory_space<vmem>>, vector<72x512xf32>
    %cst_82 = arith.constant dense<0.000000e+00> : vector<16x512xf32>
    %160 = tpu.matmul %158, %159, %cst_82 {dimension_numbers = #tpu.dot_dimension_numbers<[1], [0], [0], [1], [0, 0, 1, 1], [], []>} : vector<16x72xf32>, vector<72x512xf32>, vector<16x512xf32> -> vector<16x512xf32>
    %c0_83 = arith.constant 0 : index
    %c0_84 = arith.constant 0 : index
    %161 = vector.load %arg7[%c0_83, %c0_84] : memref<16x1xf32, #tpu.memory_space<vmem>>, vector<16x1xf32>
    %162 = vector.broadcast %161 : vector<16x1xf32> to vector<16x512xf32>
    %163 = arith.addf %160, %162 : vector<16x512xf32>
    %cst_85 = arith.constant 0.000000e+00 : f32
    %164 = vector.broadcast %cst_85 : f32 to vector<16x512xf32>
    %165 = arith.maximumf %163, %164 : vector<16x512xf32>
    %166 = vector.extract_strided_slice %165 {offsets = [0, 0], sizes = [8, 512], strides = [1, 1]} : vector<16x512xf32> to vector<8x512xf32>
    %167 = vector.extract_strided_slice %165 {offsets = [8, 0], sizes = [8, 512], strides = [1, 1]} : vector<16x512xf32> to vector<8x512xf32>
    %168 = arith.mulf %103, %166 : vector<8x512xf32>
    %c17_i32_86 = arith.constant 17 : i32
    %169 = tpu.dynamic_rotate %168 by %c17_i32_86 dim 1 : vector<8x512xf32>, i32 -> vector<8x512xf32>
    %170 = arith.andi %3, %7 : vector<1x512xi1>
    %cst_87 = arith.constant 0.000000e+00 : f32
    %171 = vector.shape_cast %170 : vector<1x512xi1> to vector<1x512xi1>
    %172 = vector.broadcast %171 : vector<1x512xi1> to vector<8x512xi1>
    %173 = vector.broadcast %cst_87 : f32 to vector<8x512xf32>
    %174 = arith.select %172, %169, %173 : vector<8x512xi1>, vector<8x512xf32>
    %c0_88 = arith.constant 0 : index
    %c0_89 = arith.constant 0 : index
    %175 = vector.load %arg13[%c0_88, %c0_89] : memref<72x512xf32, #tpu.memory_space<vmem>>, vector<8x512xf32>
    tpu.vector_store %arg13[%c0_88, %c0_89], %174 {strides = array<i32>} : memref<72x512xf32, #tpu.memory_space<vmem>>, vector<8x512xf32>,
    %c16_i32_90 = arith.constant 16 : i32
    %176 = tpu.dynamic_rotate %168 by %c16_i32_90 dim 1 : vector<8x512xf32>, i32 -> vector<8x512xf32>
    %cst_91 = arith.constant 0.000000e+00 : f32
    %177 = vector.shape_cast %3 : vector<1x512xi1> to vector<1x512xi1>
    %178 = vector.broadcast %177 : vector<1x512xi1> to vector<8x512xi1>
    %179 = vector.broadcast %cst_91 : f32 to vector<8x512xf32>
    %180 = arith.select %178, %176, %179 : vector<8x512xi1>, vector<8x512xf32>
    %c8_92 = arith.constant 8 : index
    %c0_93 = arith.constant 0 : index
    %181 = vector.load %arg13[%c8_92, %c0_93] : memref<72x512xf32, #tpu.memory_space<vmem>>, vector<8x512xf32>
    tpu.vector_store %arg13[%c8_92, %c0_93], %180 {strides = array<i32>} : memref<72x512xf32, #tpu.memory_space<vmem>>, vector<8x512xf32>,
    %c15_i32_94 = arith.constant 15 : i32
    %182 = tpu.dynamic_rotate %168 by %c15_i32_94 dim 1 : vector<8x512xf32>, i32 -> vector<8x512xf32>
    %183 = arith.andi %3, %9 : vector<1x512xi1>
    %cst_95 = arith.constant 0.000000e+00 : f32
    %184 = vector.shape_cast %183 : vector<1x512xi1> to vector<1x512xi1>
    %185 = vector.broadcast %184 : vector<1x512xi1> to vector<8x512xi1>
    %186 = vector.broadcast %cst_95 : f32 to vector<8x512xf32>
    %187 = arith.select %185, %182, %186 : vector<8x512xi1>, vector<8x512xf32>
    %c16_96 = arith.constant 16 : index
    %c0_97 = arith.constant 0 : index
    %188 = vector.load %arg13[%c16_96, %c0_97] : memref<72x512xf32, #tpu.memory_space<vmem>>, vector<8x512xf32>
    tpu.vector_store %arg13[%c16_96, %c0_97], %187 {strides = array<i32>} : memref<72x512xf32, #tpu.memory_space<vmem>>, vector<8x512xf32>,
    %c1_i32_98 = arith.constant 1 : i32
    %189 = tpu.dynamic_rotate %168 by %c1_i32_98 dim 1 : vector<8x512xf32>, i32 -> vector<8x512xf32>
    %cst_99 = arith.constant 0.000000e+00 : f32
    %190 = vector.shape_cast %7 : vector<1x512xi1> to vector<1x512xi1>
    %191 = vector.broadcast %190 : vector<1x512xi1> to vector<8x512xi1>
    %192 = vector.broadcast %cst_99 : f32 to vector<8x512xf32>
    %193 = arith.select %191, %189, %192 : vector<8x512xi1>, vector<8x512xf32>
    %c24_100 = arith.constant 24 : index
    %c0_101 = arith.constant 0 : index
    %194 = vector.load %arg13[%c24_100, %c0_101] : memref<72x512xf32, #tpu.memory_space<vmem>>, vector<8x512xf32>
    tpu.vector_store %arg13[%c24_100, %c0_101], %193 {strides = array<i32>} : memref<72x512xf32, #tpu.memory_space<vmem>>, vector<8x512xf32>,
    %c32_102 = arith.constant 32 : index
    %c0_103 = arith.constant 0 : index
    %195 = vector.load %arg13[%c32_102, %c0_103] : memref<72x512xf32, #tpu.memory_space<vmem>>, vector<8x512xf32>
    tpu.vector_store %arg13[%c32_102, %c0_103], %168 {strides = array<i32>} : memref<72x512xf32, #tpu.memory_space<vmem>>, vector<8x512xf32>,
    %c511_i32_104 = arith.constant 511 : i32
    %196 = tpu.dynamic_rotate %168 by %c511_i32_104 dim 1 : vector<8x512xf32>, i32 -> vector<8x512xf32>
    %cst_105 = arith.constant 0.000000e+00 : f32
    %197 = vector.shape_cast %9 : vector<1x512xi1> to vector<1x512xi1>
    %198 = vector.broadcast %197 : vector<1x512xi1> to vector<8x512xi1>
    %199 = vector.broadcast %cst_105 : f32 to vector<8x512xf32>
    %200 = arith.select %198, %196, %199 : vector<8x512xi1>, vector<8x512xf32>
    %c40_106 = arith.constant 40 : index
    %c0_107 = arith.constant 0 : index
    %201 = vector.load %arg13[%c40_106, %c0_107] : memref<72x512xf32, #tpu.memory_space<vmem>>, vector<8x512xf32>
    tpu.vector_store %arg13[%c40_106, %c0_107], %200 {strides = array<i32>} : memref<72x512xf32, #tpu.memory_space<vmem>>, vector<8x512xf32>,
    %c497_i32_108 = arith.constant 497 : i32
    %202 = tpu.dynamic_rotate %168 by %c497_i32_108 dim 1 : vector<8x512xf32>, i32 -> vector<8x512xf32>
    %203 = arith.andi %5, %7 : vector<1x512xi1>
    %cst_109 = arith.constant 0.000000e+00 : f32
    %204 = vector.shape_cast %203 : vector<1x512xi1> to vector<1x512xi1>
    %205 = vector.broadcast %204 : vector<1x512xi1> to vector<8x512xi1>
    %206 = vector.broadcast %cst_109 : f32 to vector<8x512xf32>
    %207 = arith.select %205, %202, %206 : vector<8x512xi1>, vector<8x512xf32>
    %c48_110 = arith.constant 48 : index
    %c0_111 = arith.constant 0 : index
    %208 = vector.load %arg13[%c48_110, %c0_111] : memref<72x512xf32, #tpu.memory_space<vmem>>, vector<8x512xf32>
    tpu.vector_store %arg13[%c48_110, %c0_111], %207 {strides = array<i32>} : memref<72x512xf32, #tpu.memory_space<vmem>>, vector<8x512xf32>,
    %c496_i32_112 = arith.constant 496 : i32
    %209 = tpu.dynamic_rotate %168 by %c496_i32_112 dim 1 : vector<8x512xf32>, i32 -> vector<8x512xf32>
    %cst_113 = arith.constant 0.000000e+00 : f32
    %210 = vector.shape_cast %5 : vector<1x512xi1> to vector<1x512xi1>
    %211 = vector.broadcast %210 : vector<1x512xi1> to vector<8x512xi1>
    %212 = vector.broadcast %cst_113 : f32 to vector<8x512xf32>
    %213 = arith.select %211, %209, %212 : vector<8x512xi1>, vector<8x512xf32>
    %c56_114 = arith.constant 56 : index
    %c0_115 = arith.constant 0 : index
    %214 = vector.load %arg13[%c56_114, %c0_115] : memref<72x512xf32, #tpu.memory_space<vmem>>, vector<8x512xf32>
    tpu.vector_store %arg13[%c56_114, %c0_115], %213 {strides = array<i32>} : memref<72x512xf32, #tpu.memory_space<vmem>>, vector<8x512xf32>,
    %c495_i32_116 = arith.constant 495 : i32
    %215 = tpu.dynamic_rotate %168 by %c495_i32_116 dim 1 : vector<8x512xf32>, i32 -> vector<8x512xf32>
    %216 = arith.andi %5, %9 : vector<1x512xi1>
    %cst_117 = arith.constant 0.000000e+00 : f32
    %217 = vector.shape_cast %216 : vector<1x512xi1> to vector<1x512xi1>
    %218 = vector.broadcast %217 : vector<1x512xi1> to vector<8x512xi1>
    %219 = vector.broadcast %cst_117 : f32 to vector<8x512xf32>
    %220 = arith.select %218, %215, %219 : vector<8x512xi1>, vector<8x512xf32>
    %c64_118 = arith.constant 64 : index
    %c0_119 = arith.constant 0 : index
    %221 = vector.load %arg13[%c64_118, %c0_119] : memref<72x512xf32, #tpu.memory_space<vmem>>, vector<8x512xf32>
    tpu.vector_store %arg13[%c64_118, %c0_119], %220 {strides = array<i32>} : memref<72x512xf32, #tpu.memory_space<vmem>>, vector<8x512xf32>,
    %c0_120 = arith.constant 0 : index
    %c0_121 = arith.constant 0 : index
    %222 = vector.load %arg8[%c0_120, %c0_121] : memref<8x72xf32, #tpu.memory_space<vmem>>, vector<8x72xf32>
    %c0_122 = arith.constant 0 : index
    %c0_123 = arith.constant 0 : index
    %223 = vector.load %arg13[%c0_122, %c0_123] : memref<72x512xf32, #tpu.memory_space<vmem>>, vector<72x512xf32>
    %cst_124 = arith.constant dense<0.000000e+00> : vector<8x512xf32>
    %224 = tpu.matmul %222, %223, %cst_124 {dimension_numbers = #tpu.dot_dimension_numbers<[1], [0], [0], [1], [0, 0, 1, 1], [], []>} : vector<8x72xf32>, vector<72x512xf32>, vector<8x512xf32> -> vector<8x512xf32>
    %c0_125 = arith.constant 0 : index
    %c0_126 = arith.constant 0 : index
    %225 = vector.load %arg9[%c0_125, %c0_126] : memref<8x1xf32, #tpu.memory_space<vmem>>, vector<8x1xf32>
    %226 = vector.broadcast %225 : vector<8x1xf32> to vector<8x512xf32>
    %227 = arith.addf %224, %226 : vector<8x512xf32>
    %cst_127 = arith.constant 0.000000e+00 : f32
    %228 = vector.broadcast %cst_127 : f32 to vector<8x512xf32>
    %229 = arith.maximumf %227, %228 : vector<8x512xf32>
    %230 = arith.mulf %167, %229 : vector<8x512xf32>
    %c0_128 = arith.constant 0 : index
    %c0_129 = arith.constant 0 : index
    %231 = vector.load %arg12[%c0_128, %c0_129] : memref<8x512xf32, #tpu.memory_space<vmem>>, vector<8x512xf32>
    tpu.vector_store %arg12[%c0_128, %c0_129], %230 {strides = array<i32>} : memref<8x512xf32, #tpu.memory_space<vmem>>, vector<8x512xf32>,
    return
  }
}

</mosaic_0001>

<llo_original>
// kernel: tpu_custom_call.1
$region0: #{tpu_custom_call.1}
  #allocation0 [shape = 'u32[]', space=smem, size = 0x4, offset = 0x4, fixed_abs, tag = 'smem constant byte address 0x4 - core index']
  #allocation1 [shape = 'u32[144,128]{1,0:T(1,128)}', space=vmem, size = 0x12000, scoped, tag = 'internal scratch']
  #allocation2 [shape = 'f32[72,512]{1,0:T(8,128)}', space=vmem, size = 0x24000, scoped, tag = 'scratch operand']
  %s0 = inlined_call_operand.vmem [shape: f32[8,512], index: 0, kind: input, shape index: {}]
  %s1 = inlined_call_operand.hbm [shape: f32[8,512], index: 1, kind: input, shape index: {}]
  %s2 = inlined_call_operand.hbm [shape: s32[1,512], index: 2, kind: input, shape index: {}]
  %s3 = inlined_call_operand.hbm [shape: s32[1,512], index: 3, kind: input, shape index: {}]
  %s4 = inlined_call_operand.vmem [shape: f32[8,72], index: 4, kind: input, shape index: {}]
  %s5 = inlined_call_operand.vmem [shape: f32[8,1], index: 5, kind: input, shape index: {}]
  %s6 = inlined_call_operand.vmem [shape: f32[16,72], index: 6, kind: input, shape index: {}]
  %s7 = inlined_call_operand.vmem [shape: f32[16,1], index: 7, kind: input, shape index: {}]
  %s8 = inlined_call_operand.vmem [shape: f32[8,72], index: 8, kind: input, shape index: {}]
  %s9 = inlined_call_operand.vmem [shape: f32[8,1], index: 9, kind: input, shape index: {}]
  %s10 = inlined_call_operand.vmem [shape: f32[8,1], index: 10, kind: input, shape index: {}]
  %s11 = inlined_call_operand.vmem [shape: f32[8,1], index: 11, kind: input, shape index: {}]
  %s12 = inlined_call_operand.hbm [shape: f32[8,512], index: 12, kind: output, shape index: {}]
  %s13 = sld [smem:[#allocation0]]
  $region70: #{tpu_custom_call.1} parent=0
    _
  %s15 = ssub.s32 1, %s13
  %s16 = scalar_select 0, %s15, %s13
  $region1: #{tpu_custom_call.1} parent=0
    #allocation3 [shape = 'u8[16384]{0}', space=vmem, size = 0x4000, scoped, tag = 'input window, operand 1, single buffered']
    #allocation4 [shape = 's32[1]{0}', space=sflag, size = 0x4, scoped, tag = 'scoped memory for tpu_custom_call.1']
    #allocation5 [shape = 's32[1]{0}', space=sflag, size = 0x4, scoped, tag = 'scoped memory for tpu_custom_call.1']
    #allocation6 [shape = 'u8[2048]{0}', space=vmem, size = 0x800, scoped, tag = 'input window, operand 2, single buffered']
    #allocation7 [shape = 's32[1]{0}', space=sflag, size = 0x4, scoped, tag = 'scoped memory for tpu_custom_call.1']
    #allocation8 [shape = 'u8[2048]{0}', space=vmem, size = 0x800, scoped, tag = 'input window, operand 3, single buffered']
    #allocation9 [shape = 'u8[16384]{0}', space=vmem, size = 0x4000, scoped, tag = 'output window, operand 0, single buffered']
    %17 = vsyncpa [#allocation4], 0
    %18 = vsyncpa [#allocation7], 0
    %19 = vsyncpa [#allocation5], 0
    // Predicated region
    $region2: #{tpu_custom_call.1} parent=1 // pred_check
      _
    $region3: #{tpu_custom_call.1} parent=1 // pred_check_branch
      %21 = sbr.rel (0) target = $region5
    $region4: #{tpu_custom_call.1} parent=1 // pred_region
      _
    $region5: #{tpu_custom_call.1} parent=1 // pred_fallthru
      _
    // Predicated region
    $region6: #{tpu_custom_call.1} parent=1 // pred_check
      _
    $region7: #{tpu_custom_call.1} parent=1 // pred_check_branch
      %23 = sbr.rel (0) target = $region9
    $region8: #{tpu_custom_call.1} parent=1 // pred_region
      %s25 = ssub.s32 512, 512
      %26 = vsyncadd [#allocation4], %s25
      %s28 = sshll.u32 [#allocation3], 4
      %s29 = int_to_ptr.vmem [resolvable:$true] %s28
      %31 = dma.hbm_to_vmem [thread:$0]  %s1, 512, %s29, [#allocation4]
    $region9: #{tpu_custom_call.1} parent=1 // pred_fallthru
      _
    // Predicated region
    $region10: #{tpu_custom_call.1} parent=1 // pred_check
      _
    $region11: #{tpu_custom_call.1} parent=1 // pred_check_branch
      %33 = sbr.rel (0) target = $region13
    $region12: #{tpu_custom_call.1} parent=1 // pred_region
      %s35 = ssub.s32 64, 64
      %36 = vsyncadd [#allocation7], %s35
      %s38 = sshll.u32 [#allocation6], 4
      %s39 = int_to_ptr.vmem [resolvable:$true] %s38
      %41 = dma.hbm_to_vmem [thread:$0]  %s2, 64, %s39, [#allocation7]
    $region13: #{tpu_custom_call.1} parent=1 // pred_fallthru
      _
    // Predicated region
    $region14: #{tpu_custom_call.1} parent=1 // pred_check
      _
    $region15: #{tpu_custom_call.1} parent=1 // pred_check_branch
      %43 = sbr.rel (0) target = $region17
    $region16: #{tpu_custom_call.1} parent=1 // pred_region
      %s45 = ssub.s32 64, 64
      %46 = vsyncadd [#allocation7], %s45
      %s48 = sshll.u32 [#allocation8], 4
      %s49 = int_to_ptr.vmem [resolvable:$true] %s48
      %51 = dma.hbm_to_vmem [thread:$0]  %s3, 64, %s49, [#allocation7]
    $region17: #{tpu_custom_call.1} parent=1 // pred_fallthru
      _
    // Predicated region
    $region18: #{tpu_custom_call.1} parent=1 // pred_check
      _
    $region19: #{tpu_custom_call.1} parent=1 // pred_check_branch
      %53 = sbr.rel (0) target = $region21
    $region20: #{tpu_custom_call.1} parent=1 // pred_region
      _
    $region21: #{tpu_custom_call.1} parent=1 // pred_fallthru
      _
    // Predicated region
    $region22: #{tpu_custom_call.1} parent=1 // pred_check
      _
    $region23: #{tpu_custom_call.1} parent=1 // pred_check_branch
      %55 = sbr.rel (0) target = $region25
    $region24: #{tpu_custom_call.1} parent=1 // pred_region
      _
    $region25: #{tpu_custom_call.1} parent=1 // pred_fallthru
      _
    // Predicated region
    $region26: #{tpu_custom_call.1} parent=1 // pred_check
      _
    $region27: #{tpu_custom_call.1} parent=1 // pred_check_branch
      %57 = sbr.rel (0) target = $region29
    $region28: #{tpu_custom_call.1} parent=1 // pred_region
      _
    $region29: #{tpu_custom_call.1} parent=1 // pred_fallthru
      _
    // Predicated region
    $region30: #{tpu_custom_call.1} parent=1 // pred_check
      _
    $region31: #{tpu_custom_call.1} parent=1 // pred_check_branch
      %59 = sbr.rel (0) target = $region33
    $region32: #{tpu_custom_call.1} parent=1 // pred_region
      _
    $region33: #{tpu_custom_call.1} parent=1 // pred_fallthru
      _
    // Predicated region
    $region34: #{tpu_custom_call.1} parent=1 // pred_check
      _
    $region35: #{tpu_custom_call.1} parent=1 // pred_check_branch
      %61 = sbr.rel (0) target = $region37
    $region36: #{tpu_custom_call.1} parent=1 // pred_region
      _
    $region37: #{tpu_custom_call.1} parent=1 // pred_fallthru
      _
    // Predicated region
    $region38: #{tpu_custom_call.1} parent=1 // pred_check
      _
    $region39: #{tpu_custom_call.1} parent=1 // pred_check_branch
      %63 = sbr.rel (0) target = $region41
    $region40: #{tpu_custom_call.1} parent=1 // pred_region
      _
    $region41: #{tpu_custom_call.1} parent=1 // pred_fallthru
      _
    // Predicated region
    $region42: #{tpu_custom_call.1} parent=1 // pred_check
      _
    $region43: #{tpu_custom_call.1} parent=1 // pred_check_branch
      %65 = sbr.rel (0) target = $region45
    $region44: #{tpu_custom_call.1} parent=1 // pred_region
      _
    $region45: #{tpu_custom_call.1} parent=1 // pred_fallthru
      _
    // Predicated region
    $region46: #{tpu_custom_call.1} parent=1 // pred_check
      _
    $region47: #{tpu_custom_call.1} parent=1 // pred_check_branch
      %67 = sbr.rel (0) target = $region49
    $region48: #{tpu_custom_call.1} parent=1 // pred_region
      _
    $region49: #{tpu_custom_call.1} parent=1 // pred_fallthru
      _
    // Predicated region
    $region50: #{tpu_custom_call.1} parent=1 // pred_check
      _
    $region51: #{tpu_custom_call.1} parent=1 // pred_check_branch
      %69 = sbr.rel (0) target = $region53
    $region52: #{tpu_custom_call.1} parent=1 // pred_region
      %70 = dma.done [#allocation4], 512
    $region53: #{tpu_custom_call.1} parent=1 // pred_fallthru
      _
    // Predicated region
    $region54: #{tpu_custom_call.1} parent=1 // pred_check
      _
    $region55: #{tpu_custom_call.1} parent=1 // pred_check_branch
      %72 = sbr.rel (0) target = $region57
    $region56: #{tpu_custom_call.1} parent=1 // pred_region
      %73 = dma.done [#allocation7], 64
    $region57: #{tpu_custom_call.1} parent=1 // pred_fallthru
      _
    // Predicated region
    $region58: #{tpu_custom_call.1} parent=1 // pred_check
      _
    $region59: #{tpu_custom_call.1} parent=1 // pred_check_branch
      %75 = sbr.rel (0) target = $region61
    $region60: #{tpu_custom_call.1} parent=1 // pred_region
      %76 = dma.done [#allocation7], 64
    $region61: #{tpu_custom_call.1} parent=1 // pred_fallthru
      _
    %v77 = vld [vmem:[#allocation6] sm:$0xf]
    %v78 = vld [vmem:[#allocation8] sm:$0xf]
    %vm79 = vcmp.ge.s32.totalorder %v77, 1
    %vm80 = vcmp.le.s32.totalorder %v77, 14
    %vm81 = vcmp.ge.s32.totalorder %v78, 1
    %vm82 = vcmp.le.s32.totalorder %v78, 14
    %vm83 = vcmp.ge.s32.totalorder %v77, 0
    %v84 = vsel %vm83, 1, 0
    %v85 = vcvt.s32.f32 %v84
    %v86 = vld [vmem:[%s0] sm:$0xff]
    %v87 = vld [vmem:[%s0 + $0x8] sm:$0xff]
    %v88 = vld [vmem:[%s0 + $0x10] sm:$0xff]
    %v89 = vld [vmem:[%s0 + $0x18] sm:$0xff]
    %90 = vrot.lane.b32.xlu0 %v86, 17
    %v91 = vpop.permute.xlu0 %90
    %92 = vrot.lane.b32.xlu0 %v87, 17
    %v93 = vpop.permute.xlu0 %92
    %94 = vrot.lane.b32.xlu0 %v88, 17
    %v95 = vpop.permute.xlu0 %94
    %96 = vrot.lane.b32.xlu0 %v89, 17
    %v97 = vpop.permute.xlu0 %96
    %v98 = vlaneseq
    %v99 = vand.u32 %v98, 127
    %vm100 = vcmp.lt.s32.totalorder %v99, 17
    %v101 = vsel %vm100, %v95, %v97
    %v102 = vsel %vm100, %v93, %v95
    %v103 = vsel %vm100, %v91, %v93
    %v104 = vsel %vm100, %v97, %v91
    %vm105 = vmand %vm79, %vm81
    %v106 = vsel %vm105, 1, 0
    %v107 = vlaneseq
    %v108 = vshrl.u32 %v107, 7
    %v109 = vsub.s32 0, %v108
    %v110 = vrot.slane %v106, %v109
    %v111 = vlaneseq
    %v112 = vshrl.u32 %v111, 7
    %v113 = vsub.s32 1, %v112
    %v114 = vrot.slane %v106, %v113
    %v115 = vlaneseq
    %v116 = vshrl.u32 %v115, 7
    %v117 = vsub.s32 2, %v116
    %v118 = vrot.slane %v106, %v117
    %v119 = vlaneseq
    %v120 = vshrl.u32 %v119, 7
    %v121 = vsub.s32 3, %v120
    %v122 = vrot.slane %v106, %v121
    %vm123 = vcmp.eq.s32.totalorder %v110, 1
    %vm124 = vcmp.eq.s32.totalorder %v114, 1
    %vm125 = vcmp.eq.s32.totalorder %v118, 1
    %vm126 = vcmp.eq.s32.totalorder %v122, 1
    %v127 = vsel %vm123, %v104, 0.0
    %v128 = vsel %vm124, %v103, 0.0
    %v129 = vsel %vm125, %v102, 0.0
    %v130 = vsel %vm126, %v101, 0.0
    %131 = vst [vmem:[#allocation2] sm:$0xff] %v127
    %132 = vst [vmem:[#allocation2 + $0x8] sm:$0xff] %v128
    %133 = vst [vmem:[#allocation2 + $0x10] sm:$0xff] %v129
    %134 = vst [vmem:[#allocation2 + $0x18] sm:$0xff] %v130
    %135 = vrot.lane.b32.xlu0 %v86, 16
    %v136 = vpop.permute.xlu0 %135
    %137 = vrot.lane.b32.xlu0 %v87, 16
    %v138 = vpop.permute.xlu0 %137
    %139 = vrot.lane.b32.xlu0 %v88, 16
    %v140 = vpop.permute.xlu0 %139
    %141 = vrot.lane.b32.xlu0 %v89, 16
    %v142 = vpop.permute.xlu0 %141
    %vm143 = vcmp.lt.s32.totalorder %v99, 16
    %v144 = vsel %vm143, %v140, %v142
    %v145 = vsel %vm143, %v138, %v140
    %v146 = vsel %vm143, %v136, %v138
    %v147 = vsel %vm143, %v142, %v136
    %v148 = vsel %vm79, 1, 0
    %v149 = vlaneseq
    %v150 = vshrl.u32 %v149, 7
    %v151 = vsub.s32 0, %v150
    %v152 = vrot.slane %v148, %v151
    %v153 = vlaneseq
    %v154 = vshrl.u32 %v153, 7
    %v155 = vsub.s32 1, %v154
    %v156 = vrot.slane %v148, %v155
    %v157 = vlaneseq
    %v158 = vshrl.u32 %v157, 7
    %v159 = vsub.s32 2, %v158
    %v160 = vrot.slane %v148, %v159
    %v161 = vlaneseq
    %v162 = vshrl.u32 %v161, 7
    %v163 = vsub.s32 3, %v162
    %v164 = vrot.slane %v148, %v163
    %vm165 = vcmp.eq.s32.totalorder %v152, 1
    %vm166 = vcmp.eq.s32.totalorder %v156, 1
    %vm167 = vcmp.eq.s32.totalorder %v160, 1
    %vm168 = vcmp.eq.s32.totalorder %v164, 1
    %v169 = vsel %vm165, %v147, 0.0
    %v170 = vsel %vm166, %v146, 0.0
    %v171 = vsel %vm167, %v145, 0.0
    %v172 = vsel %vm168, %v144, 0.0
    %173 = vst [vmem:[#allocation2 + $0x20] sm:$0xff] %v169
    %174 = vst [vmem:[#allocation2 + $0x28] sm:$0xff] %v170
    %175 = vst [vmem:[#allocation2 + $0x30] sm:$0xff] %v171
    %176 = vst [vmem:[#allocation2 + $0x38] sm:$0xff] %v172
    %177 = vrot.lane.b32.xlu0 %v86, 15
    %v178 = vpop.permute.xlu0 %177
    %179 = vrot.lane.b32.xlu0 %v87, 15
    %v180 = vpop.permute.xlu0 %179
    %181 = vrot.lane.b32.xlu0 %v88, 15
    %v182 = vpop.permute.xlu0 %181
    %183 = vrot.lane.b32.xlu0 %v89, 15
    %v184 = vpop.permute.xlu0 %183
    %vm185 = vcmp.lt.s32.totalorder %v99, 15
    %v186 = vsel %vm185, %v182, %v184
    %v187 = vsel %vm185, %v180, %v182
    %v188 = vsel %vm185, %v178, %v180
    %v189 = vsel %vm185, %v184, %v178
    %vm190 = vmand %vm79, %vm82
    %v191 = vsel %vm190, 1, 0
    %v192 = vlaneseq
    %v193 = vshrl.u32 %v192, 7
    %v194 = vsub.s32 0, %v193
    %v195 = vrot.slane %v191, %v194
    %v196 = vlaneseq
    %v197 = vshrl.u32 %v196, 7
    %v198 = vsub.s32 1, %v197
    %v199 = vrot.slane %v191, %v198
    %v200 = vlaneseq
    %v201 = vshrl.u32 %v200, 7
    %v202 = vsub.s32 2, %v201
    %v203 = vrot.slane %v191, %v202
    %v204 = vlaneseq
    %v205 = vshrl.u32 %v204, 7
    %v206 = vsub.s32 3, %v205
    %v207 = vrot.slane %v191, %v206
    %vm208 = vcmp.eq.s32.totalorder %v195, 1
    %vm209 = vcmp.eq.s32.totalorder %v199, 1
    %vm210 = vcmp.eq.s32.totalorder %v203, 1
    %vm211 = vcmp.eq.s32.totalorder %v207, 1
    %v212 = vsel %vm208, %v189, 0.0
    %v213 = vsel %vm209, %v188, 0.0
    %v214 = vsel %vm210, %v187, 0.0
    %v215 = vsel %vm211, %v186, 0.0
    %216 = vst [vmem:[#allocation2 + $0x40] sm:$0xff] %v212
    %217 = vst [vmem:[#allocation2 + $0x48] sm:$0xff] %v213
    %218 = vst [vmem:[#allocation2 + $0x50] sm:$0xff] %v214
    %219 = vst [vmem:[#allocation2 + $0x58] sm:$0xff] %v215
    %220 = vrot.lane.b32.xlu0 %v86, 1
    %v221 = vpop.permute.xlu0 %220
    %222 = vrot.lane.b32.xlu0 %v87, 1
    %v223 = vpop.permute.xlu0 %222
    %224 = vrot.lane.b32.xlu0 %v88, 1
    %v225 = vpop.permute.xlu0 %224
    %226 = vrot.lane.b32.xlu0 %v89, 1
    %v227 = vpop.permute.xlu0 %226
    %vm228 = vcmp.lt.s32.totalorder %v99, 1
    %v229 = vsel %vm228, %v225, %v227
    %v230 = vsel %vm228, %v223, %v225
    %v231 = vsel %vm228, %v221, %v223
    %v232 = vsel %vm228, %v227, %v221
    %v233 = vsel %vm81, 1, 0
    %v234 = vlaneseq
    %v235 = vshrl.u32 %v234, 7
    %v236 = vsub.s32 0, %v235
    %v237 = vrot.slane %v233, %v236
    %v238 = vlaneseq
    %v239 = vshrl.u32 %v238, 7
    %v240 = vsub.s32 1, %v239
    %v241 = vrot.slane %v233, %v240
    %v242 = vlaneseq
    %v243 = vshrl.u32 %v242, 7
    %v244 = vsub.s32 2, %v243
    %v245 = vrot.slane %v233, %v244
    %v246 = vlaneseq
    %v247 = vshrl.u32 %v246, 7
    %v248 = vsub.s32 3, %v247
    %v249 = vrot.slane %v233, %v248
    %vm250 = vcmp.eq.s32.totalorder %v237, 1
    %vm251 = vcmp.eq.s32.totalorder %v241, 1
    %vm252 = vcmp.eq.s32.totalorder %v245, 1
    %vm253 = vcmp.eq.s32.totalorder %v249, 1
    %v254 = vsel %vm250, %v232, 0.0
    %v255 = vsel %vm251, %v231, 0.0
    %v256 = vsel %vm252, %v230, 0.0
    %v257 = vsel %vm253, %v229, 0.0
    %258 = vst [vmem:[#allocation2 + $0x60] sm:$0xff] %v254
    %259 = vst [vmem:[#allocation2 + $0x68] sm:$0xff] %v255
    %260 = vst [vmem:[#allocation2 + $0x70] sm:$0xff] %v256
    %261 = vst [vmem:[#allocation2 + $0x78] sm:$0xff] %v257
    %262 = vst [vmem:[#allocation2 + $0x80] sm:$0xff] %v86
    %263 = vst [vmem:[#allocation2 + $0x88] sm:$0xff] %v87
    %264 = vst [vmem:[#allocation2 + $0x90] sm:$0xff] %v88
    %265 = vst [vmem:[#allocation2 + $0x98] sm:$0xff] %v89
    %266 = vrot.lane.b32.xlu0 %v86, 127
    %v267 = vpop.permute.xlu0 %266
    %268 = vrot.lane.b32.xlu0 %v87, 127
    %v269 = vpop.permute.xlu0 %268
    %270 = vrot.lane.b32.xlu0 %v88, 127
    %v271 = vpop.permute.xlu0 %270
    %272 = vrot.lane.b32.xlu0 %v89, 127
    %v273 = vpop.permute.xlu0 %272
    %vm274 = vcmp.lt.s32.totalorder %v99, 127
    %v275 = vsel %vm274, %v271, %v273
    %v276 = vsel %vm274, %v269, %v271
    %v277 = vsel %vm274, %v267, %v269
    %v278 = vsel %vm274, %v273, %v267
    %v279 = vsel %vm82, 1, 0
    %v280 = vlaneseq
    %v281 = vshrl.u32 %v280, 7
    %v282 = vsub.s32 0, %v281
    %v283 = vrot.slane %v279, %v282
    %v284 = vlaneseq
    %v285 = vshrl.u32 %v284, 7
    %v286 = vsub.s32 1, %v285
    %v287 = vrot.slane %v279, %v286
    %v288 = vlaneseq
    %v289 = vshrl.u32 %v288, 7
    %v290 = vsub.s32 2, %v289
    %v291 = vrot.slane %v279, %v290
    %v292 = vlaneseq
    %v293 = vshrl.u32 %v292, 7
    %v294 = vsub.s32 3, %v293
    %v295 = vrot.slane %v279, %v294
    %vm296 = vcmp.eq.s32.totalorder %v283, 1
    %vm297 = vcmp.eq.s32.totalorder %v287, 1
    %vm298 = vcmp.eq.s32.totalorder %v291, 1
    %vm299 = vcmp.eq.s32.totalorder %v295, 1
    %v300 = vsel %vm296, %v277, 0.0
    %v301 = vsel %vm297, %v276, 0.0
    %v302 = vsel %vm298, %v275, 0.0
    %v303 = vsel %vm299, %v278, 0.0
    %304 = vst [vmem:[#allocation2 + $0xa0] sm:$0xff] %v300
    %305 = vst [vmem:[#allocation2 + $0xa8] sm:$0xff] %v301
    %306 = vst [vmem:[#allocation2 + $0xb0] sm:$0xff] %v302
    %307 = vst [vmem:[#allocation2 + $0xb8] sm:$0xff] %v303
    %308 = vrot.lane.b32.xlu0 %v86, 113
    %v309 = vpop.permute.xlu0 %308
    %310 = vrot.lane.b32.xlu0 %v87, 113
    %v311 = vpop.permute.xlu0 %310
    %312 = vrot.lane.b32.xlu0 %v88, 113
    %v313 = vpop.permute.xlu0 %312
    %314 = vrot.lane.b32.xlu0 %v89, 113
    %v315 = vpop.permute.xlu0 %314
    %vm316 = vcmp.lt.s32.totalorder %v99, 113
    %v317 = vsel %vm316, %v313, %v315
    %v318 = vsel %vm316, %v311, %v313
    %v319 = vsel %vm316, %v309, %v311
    %v320 = vsel %vm316, %v315, %v309
    %vm321 = vmand %vm80, %vm81
    %v322 = vsel %vm321, 1, 0
    %v323 = vlaneseq
    %v324 = vshrl.u32 %v323, 7
    %v325 = vsub.s32 0, %v324
    %v326 = vrot.slane %v322, %v325
    %v327 = vlaneseq
    %v328 = vshrl.u32 %v327, 7
    %v329 = vsub.s32 1, %v328
    %v330 = vrot.slane %v322, %v329
    %v331 = vlaneseq
    %v332 = vshrl.u32 %v331, 7
    %v333 = vsub.s32 2, %v332
    %v334 = vrot.slane %v322, %v333
    %v335 = vlaneseq
    %v336 = vshrl.u32 %v335, 7
    %v337 = vsub.s32 3, %v336
    %v338 = vrot.slane %v322, %v337
    %vm339 = vcmp.eq.s32.totalorder %v326, 1
    %vm340 = vcmp.eq.s32.totalorder %v330, 1
    %vm341 = vcmp.eq.s32.totalorder %v334, 1
    %vm342 = vcmp.eq.s32.totalorder %v338, 1
    %v343 = vsel %vm339, %v319, 0.0
    %v344 = vsel %vm340, %v318, 0.0
    %v345 = vsel %vm341, %v317, 0.0
    %v346 = vsel %vm342, %v320, 0.0
    %347 = vst [vmem:[#allocation2 + $0xc0] sm:$0xff] %v343
    %348 = vst [vmem:[#allocation2 + $0xc8] sm:$0xff] %v344
    %349 = vst [vmem:[#allocation2 + $0xd0] sm:$0xff] %v345
    %350 = vst [vmem:[#allocation2 + $0xd8] sm:$0xff] %v346
    %351 = vrot.lane.b32.xlu0 %v86, 112
    %v352 = vpop.permute.xlu0 %351
    %353 = vrot.lane.b32.xlu0 %v87, 112
    %v354 = vpop.permute.xlu0 %353
    %355 = vrot.lane.b32.xlu0 %v88, 112
    %v356 = vpop.permute.xlu0 %355
    %357 = vrot.lane.b32.xlu0 %v89, 112
    %v358 = vpop.permute.xlu0 %357
    %vm359 = vcmp.lt.s32.totalorder %v99, 112
    %v360 = vsel %vm359, %v356, %v358
    %v361 = vsel %vm359, %v354, %v356
    %v362 = vsel %vm359, %v352, %v354
    %v363 = vsel %vm359, %v358, %v352
    %v364 = vsel %vm80, 1, 0
    %v365 = vlaneseq
    %v366 = vshrl.u32 %v365, 7
    %v367 = vsub.s32 0, %v366
    %v368 = vrot.slane %v364, %v367
    %v369 = vlaneseq
    %v370 = vshrl.u32 %v369, 7
    %v371 = vsub.s32 1, %v370
    %v372 = vrot.slane %v364, %v371
    %v373 = vlaneseq
    %v374 = vshrl.u32 %v373, 7
    %v375 = vsub.s32 2, %v374
    %v376 = vrot.slane %v364, %v375
    %v377 = vlaneseq
    %v378 = vshrl.u32 %v377, 7
    %v379 = vsub.s32 3, %v378
    %v380 = vrot.slane %v364, %v379
    %vm381 = vcmp.eq.s32.totalorder %v368, 1
    %vm382 = vcmp.eq.s32.totalorder %v372, 1
    %vm383 = vcmp.eq.s32.totalorder %v376, 1
    %vm384 = vcmp.eq.s32.totalorder %v380, 1
    %v385 = vsel %vm381, %v362, 0.0
    %v386 = vsel %vm382, %v361, 0.0
    %v387 = vsel %vm383, %v360, 0.0
    %v388 = vsel %vm384, %v363, 0.0
    %389 = vst [vmem:[#allocation2 + $0xe0] sm:$0xff] %v385
    %390 = vst [vmem:[#allocation2 + $0xe8] sm:$0xff] %v386
    %391 = vst [vmem:[#allocation2 + $0xf0] sm:$0xff] %v387
    %392 = vst [vmem:[#allocation2 + $0xf8] sm:$0xff] %v388
    %393 = vrot.lane.b32.xlu0 %v86, 111
    %v394 = vpop.permute.xlu0 %393
    %395 = vrot.lane.b32.xlu0 %v87, 111
    %v396 = vpop.permute.xlu0 %395
    %397 = vrot.lane.b32.xlu0 %v88, 111
    %v398 = vpop.permute.xlu0 %397
    %399 = vrot.lane.b32.xlu0 %v89, 111
    %v400 = vpop.permute.xlu0 %399
    %vm401 = vcmp.lt.s32.totalorder %v99, 111
    %v402 = vsel %vm401, %v398, %v400
    %v403 = vsel %vm401, %v396, %v398
    %v404 = vsel %vm401, %v394, %v396
    %v405 = vsel %vm401, %v400, %v394
    %vm406 = vmand %vm80, %vm82
    %v407 = vsel %vm406, 1, 0
    %v408 = vlaneseq
    %v409 = vshrl.u32 %v408, 7
    %v410 = vsub.s32 0, %v409
    %v411 = vrot.slane %v407, %v410
    %v412 = vlaneseq
    %v413 = vshrl.u32 %v412, 7
    %v414 = vsub.s32 1, %v413
    %v415 = vrot.slane %v407, %v414
    %v416 = vlaneseq
    %v417 = vshrl.u32 %v416, 7
    %v418 = vsub.s32 2, %v417
    %v419 = vrot.slane %v407, %v418
    %v420 = vlaneseq
    %v421 = vshrl.u32 %v420, 7
    %v422 = vsub.s32 3, %v421
    %v423 = vrot.slane %v407, %v422
    %vm424 = vcmp.eq.s32.totalorder %v411, 1
    %vm425 = vcmp.eq.s32.totalorder %v415, 1
    %vm426 = vcmp.eq.s32.totalorder %v419, 1
    %vm427 = vcmp.eq.s32.totalorder %v423, 1
    %v428 = vsel %vm424, %v404, 0.0
    %v429 = vsel %vm425, %v403, 0.0
    %v430 = vsel %vm426, %v402, 0.0
    %v431 = vsel %vm427, %v405, 0.0
    %432 = vst [vmem:[#allocation2 + $0x100] sm:$0xff] %v428
    %433 = vst [vmem:[#allocation2 + $0x108] sm:$0xff] %v429
    %434 = vst [vmem:[#allocation2 + $0x110] sm:$0xff] %v430
    %435 = vst [vmem:[#allocation2 + $0x118] sm:$0xff] %v431
    %v436 = vld [vmem:[%s4] sm:$0xff]
    %v437 = vld [vmem:[#allocation2] sm:$0xff]
    %v438 = vld [vmem:[#allocation2 + $0x8] sm:$0xff]
    %v439 = vld [vmem:[#allocation2 + $0x10] sm:$0xff]
    %v440 = vld [vmem:[#allocation2 + $0x18] sm:$0xff]
    %v441 = vld [vmem:[#allocation2 + $0x20] sm:$0xff]
    %v442 = vld [vmem:[#allocation2 + $0x28] sm:$0xff]
    %v443 = vld [vmem:[#allocation2 + $0x30] sm:$0xff]
    %v444 = vld [vmem:[#allocation2 + $0x38] sm:$0xff]
    %v445 = vld [vmem:[#allocation2 + $0x40] sm:$0xff]
    %v446 = vld [vmem:[#allocation2 + $0x48] sm:$0xff]
    %v447 = vld [vmem:[#allocation2 + $0x50] sm:$0xff]
    %v448 = vld [vmem:[#allocation2 + $0x58] sm:$0xff]
    %v449 = vld [vmem:[#allocation2 + $0x60] sm:$0xff]
    %v450 = vld [vmem:[#allocation2 + $0x68] sm:$0xff]
    %v451 = vld [vmem:[#allocation2 + $0x70] sm:$0xff]
    %v452 = vld [vmem:[#allocation2 + $0x78] sm:$0xff]
    %v453 = vld [vmem:[#allocation2 + $0x80] sm:$0xff]
    %v454 = vld [vmem:[#allocation2 + $0x88] sm:$0xff]
    %v455 = vld [vmem:[#allocation2 + $0x90] sm:$0xff]
    %v456 = vld [vmem:[#allocation2 + $0x98] sm:$0xff]
    %v457 = vld [vmem:[#allocation2 + $0xa0] sm:$0xff]
    %v458 = vld [vmem:[#allocation2 + $0xa8] sm:$0xff]
    %v459 = vld [vmem:[#allocation2 + $0xb0] sm:$0xff]
    %v460 = vld [vmem:[#allocation2 + $0xb8] sm:$0xff]
    %v461 = vld [vmem:[#allocation2 + $0xc0] sm:$0xff]
    %v462 = vld [vmem:[#allocation2 + $0xc8] sm:$0xff]
    %v463 = vld [vmem:[#allocation2 + $0xd0] sm:$0xff]
    %v464 = vld [vmem:[#allocation2 + $0xd8] sm:$0xff]
    %v465 = vld [vmem:[#allocation2 + $0xe0] sm:$0xff]
    %v466 = vld [vmem:[#allocation2 + $0xe8] sm:$0xff]
    %v467 = vld [vmem:[#allocation2 + $0xf0] sm:$0xff]
    %v468 = vld [vmem:[#allocation2 + $0xf8] sm:$0xff]
    %v469 = vld [vmem:[#allocation2 + $0x100] sm:$0xff]
    %v470 = vld [vmem:[#allocation2 + $0x108] sm:$0xff]
    %v471 = vld [vmem:[#allocation2 + $0x110] sm:$0xff]
    %v472 = vld [vmem:[#allocation2 + $0x118] sm:$0xff]
    %v473 = vld [vmem:[%s5] sm:$0xff]
    %475 = vset.pattern.permute.xlu0 0
    %476 = vperm.xlu0 %475, %v473
    %v477 = vpop.permute.xlu0 %476
    %vm479 = vcmask 588800
    %v481 = vsel %vm479, %v436, 0
    %483 = vmatprep.subr.mxu0 %v438
    %484 = vmatpush1.msra.mxu0 %v437
    %485 = vmatprep.subr.mxu0 %v442
    %486 = vmatpush1.msra.mxu0 %v441
    %487 = vmatprep.subr.mxu0 %v446
    %488 = vmatpush1.msra.mxu0 %v445
    %489 = vmatprep.subr.mxu0 %v450
    %490 = vmatpush1.msra.mxu0 %v449
    %491 = vmatprep.subr.mxu0 %v454
    %492 = vmatpush1.msra.mxu0 %v453
    %493 = vmatprep.subr.mxu0 %v458
    %494 = vmatpush1.msra.mxu0 %v457
    %495 = vmatprep.subr.mxu0 %v462
    %496 = vmatpush1.msra.mxu0 %v461
    %497 = vmatprep.subr.mxu0 %v466
    %498 = vmatpush1.msra.mxu0 %v465
    %499 = vmatprep.subr.mxu0 %v470
    %500 = vmatpush1.msra.mxu0 %v469
    %501 = vmatprep.subr.mxu0 0.0
    %502 = vmatpush1.msra.mxu0 0.0
    %503 = vmatprep.subr.mxu0 0.0
    %504 = vmatpush1.msra.mxu0 0.0
    %505 = vmatprep.subr.mxu0 0.0
    %506 = vmatpush1.msra.mxu0 0.0
    %507 = vmatprep.subr.mxu0 0.0
    %508 = vmatpush1.msra.mxu0 0.0
    %509 = vmatprep.subr.mxu0 0.0
    %510 = vmatpush1.msra.mxu0 0.0
    %511 = vmatprep.subr.mxu0 0.0
    %512 = vmatpush1.msra.mxu0 0.0
    %513 = vmatprep.subr.mxu0 0.0
    %514 = vmatpush1.msra.mxu0 0.0
    %515 = vmatprep.subr.mxu0 0.0
    %516 = vmatpush1.msra.mxu0 0.0
    %517 = vmatprep.subr.mxu0 0.0
    %518 = vmatpush1.msra.mxu0 0.0
    %519 = vmatprep.subr.mxu0 0.0
    %520 = vmatpush1.msra.mxu0 0.0
    %521 = vmatprep.subr.mxu0 0.0
    %522 = vmatpush1.msra.mxu0 0.0
    %523 = vmatprep.subr.mxu0 0.0
    %524 = vmatpush1.msra.mxu0 0.0
    %525 = vmatprep.subr.mxu0 0.0
    %526 = vmatpush1.msra.mxu0 0.0
    %527 = vmatprep.subr.mxu0 0.0
    %528 = vmatpush1.msra.mxu0 0.0
    %529 = vmatprep.subr.mxu0 0.0
    %530 = vmatpush1.msra.mxu0 0.0
    %531 = vmatprep.subr.mxu0 0.0
    %532 = vmatpush1.msra.mxu0 0.0
    %533 = vmatprep.subr.mxu0 0.0
    %534 = vmatpush1.msra.mxu0 0.0
    %535 = vmatprep.subr.mxu0 0.0
    %536 = vmatpush1.msra.mxu0 0.0
    %537 = vmatprep.subr.mxu0 0.0
    %538 = vmatpush1.msra.mxu0 0.0
    %539 = vmatprep.subr.mxu0 0.0
    %540 = vmatpush1.msra.mxu0 0.0
    %541 = vmatprep.subr.mxu0 0.0
    %542 = vmatpush1.msra.mxu0 0.0
    %543 = vmatprep.subr.mxu0 0.0
    %544 = vmatpush1.msra.mxu0 0.0
    %545 = vmatprep.subr.mxu0 0.0
    %546 = vmatpush1.msra.mxu0 0.0
    %547 = vmatprep.mubr.f32.mxu0 0.0
    %548 = vmatmul.mubr.f32.gmra.mrb[0].mxu0 %v481
    %v549 = vpop.f32.mrb[0].mxu0
    %v550 = vadd.f32 %v477, %v549
    %v551 = vpop.f32.mrb[0].mxu0
    %v552 = vadd.f32 %v477, %v551
    %553 = vdwg.mxu0
    %554 = vmatprep.subr.mxu0 %v440
    %555 = vmatpush1.msra.mxu0 %v439
    %556 = vmatprep.subr.mxu0 %v444
    %557 = vmatpush1.msra.mxu0 %v443
    %558 = vmatprep.subr.mxu0 %v448
    %559 = vmatpush1.msra.mxu0 %v447
    %560 = vmatprep.subr.mxu0 %v452
    %561 = vmatpush1.msra.mxu0 %v451
    %562 = vmatprep.subr.mxu0 %v456
    %563 = vmatpush1.msra.mxu0 %v455
    %564 = vmatprep.subr.mxu0 %v460
    %565 = vmatpush1.msra.mxu0 %v459
    %566 = vmatprep.subr.mxu0 %v464
    %567 = vmatpush1.msra.mxu0 %v463
    %568 = vmatprep.subr.mxu0 %v468
    %569 = vmatpush1.msra.mxu0 %v467
    %570 = vmatprep.subr.mxu0 %v472
    %571 = vmatpush1.msra.mxu0 %v471
    %572 = vmatprep.subr.mxu0 0.0
    %573 = vmatpush1.msra.mxu0 0.0
    %574 = vmatprep.subr.mxu0 0.0
    %575 = vmatpush1.msra.mxu0 0.0
    %576 = vmatprep.subr.mxu0 0.0
    %577 = vmatpush1.msra.mxu0 0.0
    %578 = vmatprep.subr.mxu0 0.0
    %579 = vmatpush1.msra.mxu0 0.0
    %580 = vmatprep.subr.mxu0 0.0
    %581 = vmatpush1.msra.mxu0 0.0
    %582 = vmatprep.subr.mxu0 0.0
    %583 = vmatpush1.msra.mxu0 0.0
    %584 = vmatprep.subr.mxu0 0.0
    %585 = vmatpush1.msra.mxu0 0.0
    %586 = vmatprep.subr.mxu0 0.0
    %587 = vmatpush1.msra.mxu0 0.0
    %588 = vmatprep.subr.mxu0 0.0
    %589 = vmatpush1.msra.mxu0 0.0
    %590 = vmatprep.subr.mxu0 0.0
    %591 = vmatpush1.msra.mxu0 0.0
    %592 = vmatprep.subr.mxu0 0.0
    %593 = vmatpush1.msra.mxu0 0.0
    %594 = vmatprep.subr.mxu0 0.0
    %595 = vmatpush1.msra.mxu0 0.0
    %596 = vmatprep.subr.mxu0 0.0
    %597 = vmatpush1.msra.mxu0 0.0
    %598 = vmatprep.subr.mxu0 0.0
    %599 = vmatpush1.msra.mxu0 0.0
    %600 = vmatprep.subr.mxu0 0.0
    %601 = vmatpush1.msra.mxu0 0.0
    %602 = vmatprep.subr.mxu0 0.0
    %603 = vmatpush1.msra.mxu0 0.0
    %604 = vmatprep.subr.mxu0 0.0
    %605 = vmatpush1.msra.mxu0 0.0
    %606 = vmatprep.subr.mxu0 0.0
    %607 = vmatpush1.msra.mxu0 0.0
    %608 = vmatprep.subr.mxu0 0.0
    %609 = vmatpush1.msra.mxu0 0.0
    %610 = vmatprep.subr.mxu0 0.0
    %611 = vmatpush1.msra.mxu0 0.0
    %612 = vmatprep.subr.mxu0 0.0
    %613 = vmatpush1.msra.mxu0 0.0
    %614 = vmatprep.subr.mxu0 0.0
    %615 = vmatpush1.msra.mxu0 0.0
    %616 = vmatprep.subr.mxu0 0.0
    %617 = vmatpush1.msra.mxu0 0.0
    %618 = vmatprep.mubr.f32.mxu0 0.0
    %619 = vmatmul.mubr.f32.gmra.mrb[0].mxu0 %v481
    %v620 = vpop.f32.mrb[0].mxu0
    %v621 = vadd.f32 %v477, %v620
    %v622 = vpop.f32.mrb[0].mxu0
    %v623 = vadd.f32 %v477, %v622
    %624 = vdwg.mxu0
    %v625 = vmax.f32 %v550, 0.0
    %v626 = vmax.f32 %v552, 0.0
    %v627 = vmax.f32 %v621, 0.0
    %v628 = vmax.f32 %v623, 0.0
    %v630 = vlaneseq
    %v631 = vshrl.u32 %v630, 7
    %v632 = vsub.s32 0, %v631
    %v633 = vrot.slane %v85, %v632
    %v634 = vlaneseq
    %v635 = vshrl.u32 %v634, 7
    %v636 = vsub.s32 1, %v635
    %v637 = vrot.slane %v85, %v636
    %v638 = vlaneseq
    %v639 = vshrl.u32 %v638, 7
    %v640 = vsub.s32 2, %v639
    %v641 = vrot.slane %v85, %v640
    %v642 = vlaneseq
    %v643 = vshrl.u32 %v642, 7
    %v644 = vsub.s32 3, %v643
    %v645 = vrot.slane %v85, %v644
    %v650 = vmul.f32 %v625, %v633
    %v651 = vmul.f32 %v626, %v637
    %v652 = vmul.f32 %v627, %v641
    %v653 = vmul.f32 %v628, %v645
    %v654 = vadd.f32 %v650, %v651
    %v655 = vadd.f32 %v654, %v652
    %v656 = vadd.f32 %v655, %v653
    %657 = vadd.xlane.f32.xlu0 %v656
    %v658 = vpop.xlane.xlu0 %657
    %v659 = vmul.f32 %v658, 0.001953125
    %v660 = vsub.f32 %v625, %v659
    %v661 = vsub.f32 %v626, %v659
    %v662 = vsub.f32 %v627, %v659
    %v663 = vsub.f32 %v628, %v659
    %v664 = vmul.f32 %v660, %v633
    %v665 = vmul.f32 %v661, %v637
    %v666 = vmul.f32 %v662, %v641
    %v667 = vmul.f32 %v663, %v645
    %v668 = vmul.f32 %v664, %v664
    %v669 = vmul.f32 %v665, %v665
    %v670 = vmul.f32 %v666, %v666
    %v671 = vmul.f32 %v667, %v667
    %v672 = vadd.f32 %v668, %v669
    %v673 = vadd.f32 %v672, %v670
    %v674 = vadd.f32 %v673, %v671
    %675 = vadd.xlane.f32.xlu0 %v674
    %v676 = vpop.xlane.xlu0 %675
    %v677 = vmul.f32 %v676, 0.001953125
    %v678 = vld [vmem:[%s10] sm:$0xff]
    %680 = vset.pattern.permute.xlu0 0
    %681 = vperm.xlu0 %680, %v678
    %v682 = vpop.permute.xlu0 %681
    %v684 = vmul.f32 %v682, %v660
    %v685 = vmul.f32 %v682, %v661
    %v686 = vmul.f32 %v682, %v662
    %v687 = vmul.f32 %v682, %v663
    %v688 = vadd.f32 %v677, 1e-05
    %v689 = vrsqrt.pop %v688
    %v690 = vmul.f32 %v684, %v689
    %v691 = vmul.f32 %v685, %v689
    %v692 = vmul.f32 %v686, %v689
    %v693 = vmul.f32 %v687, %v689
    %v694 = vld [vmem:[%s11] sm:$0xff]
    %696 = vset.pattern.permute.xlu0 0
    %697 = vperm.xlu0 %696, %v694
    %v698 = vpop.permute.xlu0 %697
    %v700 = vadd.f32 %v690, %v698
    %v701 = vadd.f32 %v691, %v698
    %v702 = vadd.f32 %v692, %v698
    %v703 = vadd.f32 %v693, %v698
    %v704 = vld [vmem:[#allocation3] sm:$0xff]
    %v705 = vld [vmem:[#allocation3 + $0x8] sm:$0xff]
    %v706 = vld [vmem:[#allocation3 + $0x10] sm:$0xff]
    %v707 = vld [vmem:[#allocation3 + $0x18] sm:$0xff]
    %708 = vrot.lane.b32.xlu0 %v704, 17
    %v709 = vpop.permute.xlu0 %708
    %710 = vrot.lane.b32.xlu0 %v705, 17
    %v711 = vpop.permute.xlu0 %710
    %712 = vrot.lane.b32.xlu0 %v706, 17
    %v713 = vpop.permute.xlu0 %712
    %714 = vrot.lane.b32.xlu0 %v707, 17
    %v715 = vpop.permute.xlu0 %714
    %v716 = vsel %vm100, %v713, %v715
    %v717 = vsel %vm100, %v711, %v713
    %v718 = vsel %vm100, %v709, %v711
    %v719 = vsel %vm100, %v715, %v709
    %v720 = vsel %vm123, %v719, 0.0
    %v721 = vsel %vm124, %v718, 0.0
    %v722 = vsel %vm125, %v717, 0.0
    %v723 = vsel %vm126, %v716, 0.0
    %724 = vst [vmem:[#allocation2] sm:$0xff] %v720
    %725 = vst [vmem:[#allocation2 + $0x8] sm:$0xff] %v721
    %726 = vst [vmem:[#allocation2 + $0x10] sm:$0xff] %v722
    %727 = vst [vmem:[#allocation2 + $0x18] sm:$0xff] %v723
    %728 = vrot.lane.b32.xlu0 %v704, 16
    %v729 = vpop.permute.xlu0 %728
    %730 = vrot.lane.b32.xlu0 %v705, 16
    %v731 = vpop.permute.xlu0 %730
    %732 = vrot.lane.b32.xlu0 %v706, 16
    %v733 = vpop.permute.xlu0 %732
    %734 = vrot.lane.b32.xlu0 %v707, 16
    %v735 = vpop.permute.xlu0 %734
    %v736 = vsel %vm143, %v733, %v735
    %v737 = vsel %vm143, %v731, %v733
    %v738 = vsel %vm143, %v729, %v731
    %v739 = vsel %vm143, %v735, %v729
    %v740 = vsel %vm165, %v739, 0.0
    %v741 = vsel %vm166, %v738, 0.0
    %v742 = vsel %vm167, %v737, 0.0
    %v743 = vsel %vm168, %v736, 0.0
    %744 = vst [vmem:[#allocation2 + $0x20] sm:$0xff] %v740
    %745 = vst [vmem:[#allocation2 + $0x28] sm:$0xff] %v741
    %746 = vst [vmem:[#allocation2 + $0x30] sm:$0xff] %v742
    %747 = vst [vmem:[#allocation2 + $0x38] sm:$0xff] %v743
    %748 = vrot.lane.b32.xlu0 %v704, 15
    %v749 = vpop.permute.xlu0 %748
    %750 = vrot.lane.b32.xlu0 %v705, 15
    %v751 = vpop.permute.xlu0 %750
    %752 = vrot.lane.b32.xlu0 %v706, 15
    %v753 = vpop.permute.xlu0 %752
    %754 = vrot.lane.b32.xlu0 %v707, 15
    %v755 = vpop.permute.xlu0 %754
    %v756 = vsel %vm185, %v753, %v755
    %v757 = vsel %vm185, %v751, %v753
    %v758 = vsel %vm185, %v749, %v751
    %v759 = vsel %vm185, %v755, %v749
    %v760 = vsel %vm208, %v759, 0.0
    %v761 = vsel %vm209, %v758, 0.0
    %v762 = vsel %vm210, %v757, 0.0
    %v763 = vsel %vm211, %v756, 0.0
    %764 = vst [vmem:[#allocation2 + $0x40] sm:$0xff] %v760
    %765 = vst [vmem:[#allocation2 + $0x48] sm:$0xff] %v761
    %766 = vst [vmem:[#allocation2 + $0x50] sm:$0xff] %v762
    %767 = vst [vmem:[#allocation2 + $0x58] sm:$0xff] %v763
    %768 = vrot.lane.b32.xlu0 %v704, 1
    %v769 = vpop.permute.xlu0 %768
    %770 = vrot.lane.b32.xlu0 %v705, 1
    %v771 = vpop.permute.xlu0 %770
    %772 = vrot.lane.b32.xlu0 %v706, 1
    %v773 = vpop.permute.xlu0 %772
    %774 = vrot.lane.b32.xlu0 %v707, 1
    %v775 = vpop.permute.xlu0 %774
    %v776 = vsel %vm228, %v773, %v775
    %v777 = vsel %vm228, %v771, %v773
    %v778 = vsel %vm228, %v769, %v771
    %v779 = vsel %vm228, %v775, %v769
    %v780 = vsel %vm250, %v779, 0.0
    %v781 = vsel %vm251, %v778, 0.0
    %v782 = vsel %vm252, %v777, 0.0
    %v783 = vsel %vm253, %v776, 0.0
    %784 = vst [vmem:[#allocation2 + $0x60] sm:$0xff] %v780
    %785 = vst [vmem:[#allocation2 + $0x68] sm:$0xff] %v781
    %786 = vst [vmem:[#allocation2 + $0x70] sm:$0xff] %v782
    %787 = vst [vmem:[#allocation2 + $0x78] sm:$0xff] %v783
    %788 = vst [vmem:[#allocation2 + $0x80] sm:$0xff] %v704
    %789 = vst [vmem:[#allocation2 + $0x88] sm:$0xff] %v705
    %790 = vst [vmem:[#allocation2 + $0x90] sm:$0xff] %v706
    %791 = vst [vmem:[#allocation2 + $0x98] sm:$0xff] %v707
    %792 = vrot.lane.b32.xlu0 %v704, 127
    %v793 = vpop.permute.xlu0 %792
    %794 = vrot.lane.b32.xlu0 %v705, 127
    %v795 = vpop.permute.xlu0 %794
    %796 = vrot.lane.b32.xlu0 %v706, 127
    %v797 = vpop.permute.xlu0 %796
    %798 = vrot.lane.b32.xlu0 %v707, 127
    %v799 = vpop.permute.xlu0 %798
    %v800 = vsel %vm274, %v797, %v799
    %v801 = vsel %vm274, %v795, %v797
    %v802 = vsel %vm274, %v793, %v795
    %v803 = vsel %vm274, %v799, %v793
    %v804 = vsel %vm296, %v802, 0.0
    %v805 = vsel %vm297, %v801, 0.0
    %v806 = vsel %vm298, %v800, 0.0
    %v807 = vsel %vm299, %v803, 0.0
    %808 = vst [vmem:[#allocation2 + $0xa0] sm:$0xff] %v804
    %809 = vst [vmem:[#allocation2 + $0xa8] sm:$0xff] %v805
    %810 = vst [vmem:[#allocation2 + $0xb0] sm:$0xff] %v806
    %811 = vst [vmem:[#allocation2 + $0xb8] sm:$0xff] %v807
    %812 = vrot.lane.b32.xlu0 %v704, 113
    %v813 = vpop.permute.xlu0 %812
    %814 = vrot.lane.b32.xlu0 %v705, 113
    %v815 = vpop.permute.xlu0 %814
    %816 = vrot.lane.b32.xlu0 %v706, 113
    %v817 = vpop.permute.xlu0 %816
    %818 = vrot.lane.b32.xlu0 %v707, 113
    %v819 = vpop.permute.xlu0 %818
    %v820 = vsel %vm316, %v817, %v819
    %v821 = vsel %vm316, %v815, %v817
    %v822 = vsel %vm316, %v813, %v815
    %v823 = vsel %vm316, %v819, %v813
    %v824 = vsel %vm339, %v822, 0.0
    %v825 = vsel %vm340, %v821, 0.0
    %v826 = vsel %vm341, %v820, 0.0
    %v827 = vsel %vm342, %v823, 0.0
    %828 = vst [vmem:[#allocation2 + $0xc0] sm:$0xff] %v824
    %829 = vst [vmem:[#allocation2 + $0xc8] sm:$0xff] %v825
    %830 = vst [vmem:[#allocation2 + $0xd0] sm:$0xff] %v826
    %831 = vst [vmem:[#allocation2 + $0xd8] sm:$0xff] %v827
    %832 = vrot.lane.b32.xlu0 %v704, 112
    %v833 = vpop.permute.xlu0 %832
    %834 = vrot.lane.b32.xlu0 %v705, 112
    %v835 = vpop.permute.xlu0 %834
    %836 = vrot.lane.b32.xlu0 %v706, 112
    %v837 = vpop.permute.xlu0 %836
    %838 = vrot.lane.b32.xlu0 %v707, 112
    %v839 = vpop.permute.xlu0 %838
    %v840 = vsel %vm359, %v837, %v839
    %v841 = vsel %vm359, %v835, %v837
    %v842 = vsel %vm359, %v833, %v835
    %v843 = vsel %vm359, %v839, %v833
    %v844 = vsel %vm381, %v842, 0.0
    %v845 = vsel %vm382, %v841, 0.0
    %v846 = vsel %vm383, %v840, 0.0
    %v847 = vsel %vm384, %v843, 0.0
    %848 = vst [vmem:[#allocation2 + $0xe0] sm:$0xff] %v844
    %849 = vst [vmem:[#allocation2 + $0xe8] sm:$0xff] %v845
    %850 = vst [vmem:[#allocation2 + $0xf0] sm:$0xff] %v846
    %851 = vst [vmem:[#allocation2 + $0xf8] sm:$0xff] %v847
    %852 = vrot.lane.b32.xlu0 %v704, 111
    %v853 = vpop.permute.xlu0 %852
    %854 = vrot.lane.b32.xlu0 %v705, 111
    %v855 = vpop.permute.xlu0 %854
    %856 = vrot.lane.b32.xlu0 %v706, 111
    %v857 = vpop.permute.xlu0 %856
    %858 = vrot.lane.b32.xlu0 %v707, 111
    %v859 = vpop.permute.xlu0 %858
    %v860 = vsel %vm401, %v857, %v859
    %v861 = vsel %vm401, %v855, %v857
    %v862 = vsel %vm401, %v853, %v855
    %v863 = vsel %vm401, %v859, %v853
    %v864 = vsel %vm424, %v862, 0.0
    %v865 = vsel %vm425, %v861, 0.0
    %v866 = vsel %vm426, %v860, 0.0
    %v867 = vsel %vm427, %v863, 0.0
    %868 = vst [vmem:[#allocation2 + $0x100] sm:$0xff] %v864
    %869 = vst [vmem:[#allocation2 + $0x108] sm:$0xff] %v865
    %870 = vst [vmem:[#allocation2 + $0x110] sm:$0xff] %v866
    %871 = vst [vmem:[#allocation2 + $0x118] sm:$0xff] %v867
    %v872 = vld [vmem:[%s6] sm:$0xff]
    %v873 = vld [vmem:[%s6 + $0x8] sm:$0xff]
    %v874 = vld [vmem:[#allocation2] sm:$0xff]
    %v875 = vld [vmem:[#allocation2 + $0x8] sm:$0xff]
    %v876 = vld [vmem:[#allocation2 + $0x10] sm:$0xff]
    %v877 = vld [vmem:[#allocation2 + $0x18] sm:$0xff]
    %v878 = vld [vmem:[#allocation2 + $0x20] sm:$0xff]
    %v879 = vld [vmem:[#allocation2 + $0x28] sm:$0xff]
    %v880 = vld [vmem:[#allocation2 + $0x30] sm:$0xff]
    %v881 = vld [vmem:[#allocation2 + $0x38] sm:$0xff]
    %v882 = vld [vmem:[#allocation2 + $0x40] sm:$0xff]
    %v883 = vld [vmem:[#allocation2 + $0x48] sm:$0xff]
    %v884 = vld [vmem:[#allocation2 + $0x50] sm:$0xff]
    %v885 = vld [vmem:[#allocation2 + $0x58] sm:$0xff]
    %v886 = vld [vmem:[#allocation2 + $0x60] sm:$0xff]
    %v887 = vld [vmem:[#allocation2 + $0x68] sm:$0xff]
    %v888 = vld [vmem:[#allocation2 + $0x70] sm:$0xff]
    %v889 = vld [vmem:[#allocation2 + $0x78] sm:$0xff]
    %v890 = vld [vmem:[#allocation2 + $0x80] sm:$0xff]
    %v891 = vld [vmem:[#allocation2 + $0x88] sm:$0xff]
    %v892 = vld [vmem:[#allocation2 + $0x90] sm:$0xff]
    %v893 = vld [vmem:[#allocation2 + $0x98] sm:$0xff]
    %v894 = vld [vmem:[#allocation2 + $0xa0] sm:$0xff]
    %v895 = vld [vmem:[#allocation2 + $0xa8] sm:$0xff]
    %v896 = vld [vmem:[#allocation2 + $0xb0] sm:$0xff]
    %v897 = vld [vmem:[#allocation2 + $0xb8] sm:$0xff]
    %v898 = vld [vmem:[#allocation2 + $0xc0] sm:$0xff]
    %v899 = vld [vmem:[#allocation2 + $0xc8] sm:$0xff]
    %v900 = vld [vmem:[#allocation2 + $0xd0] sm:$0xff]
    %v901 = vld [vmem:[#allocation2 + $0xd8] sm:$0xff]
    %v902 = vld [vmem:[#allocation2 + $0xe0] sm:$0xff]
    %v903 = vld [vmem:[#allocation2 + $0xe8] sm:$0xff]
    %v904 = vld [vmem:[#allocation2 + $0xf0] sm:$0xff]
    %v905 = vld [vmem:[#allocation2 + $0xf8] sm:$0xff]
    %v906 = vld [vmem:[#allocation2 + $0x100] sm:$0xff]
    %v907 = vld [vmem:[#allocation2 + $0x108] sm:$0xff]
    %v908 = vld [vmem:[#allocation2 + $0x110] sm:$0xff]
    %v909 = vld [vmem:[#allocation2 + $0x118] sm:$0xff]
    %v910 = vld [vmem:[%s7] sm:$0xff]
    %v911 = vld [vmem:[%s7 + $0x8] sm:$0xff]
    %913 = vset.pattern.permute.xlu0 0
    %914 = vperm.xlu0 %913, %v910
    %v915 = vpop.permute.xlu0 %914
    %918 = vset.pattern.permute.xlu0 0
    %919 = vperm.xlu0 %918, %v911
    %v920 = vpop.permute.xlu0 %919
    %v923 = vsel %vm479, %v872, 0
    %v926 = vsel %vm479, %v873, 0
    %928 = vmatprep.subr.mxu0 %v875
    %929 = vmatpush1.msra.mxu0 %v874
    %930 = vmatprep.subr.mxu0 %v879
    %931 = vmatpush1.msra.mxu0 %v878
    %932 = vmatprep.subr.mxu0 %v883
    %933 = vmatpush1.msra.mxu0 %v882
    %934 = vmatprep.subr.mxu0 %v887
    %935 = vmatpush1.msra.mxu0 %v886
    %936 = vmatprep.subr.mxu0 %v891
    %937 = vmatpush1.msra.mxu0 %v890
    %938 = vmatprep.subr.mxu0 %v895
    %939 = vmatpush1.msra.mxu0 %v894
    %940 = vmatprep.subr.mxu0 %v899
    %941 = vmatpush1.msra.mxu0 %v898
    %942 = vmatprep.subr.mxu0 %v903
    %943 = vmatpush1.msra.mxu0 %v902
    %944 = vmatprep.subr.mxu0 %v907
    %945 = vmatpush1.msra.mxu0 %v906
    %946 = vmatprep.subr.mxu0 0.0
    %947 = vmatpush1.msra.mxu0 0.0
    %948 = vmatprep.subr.mxu0 0.0
    %949 = vmatpush1.msra.mxu0 0.0
    %950 = vmatprep.subr.mxu0 0.0
    %951 = vmatpush1.msra.mxu0 0.0
    %952 = vmatprep.subr.mxu0 0.0
    %953 = vmatpush1.msra.mxu0 0.0
    %954 = vmatprep.subr.mxu0 0.0
    %955 = vmatpush1.msra.mxu0 0.0
    %956 = vmatprep.subr.mxu0 0.0
    %957 = vmatpush1.msra.mxu0 0.0
    %958 = vmatprep.subr.mxu0 0.0
    %959 = vmatpush1.msra.mxu0 0.0
    %960 = vmatprep.subr.mxu0 0.0
    %961 = vmatpush1.msra.mxu0 0.0
    %962 = vmatprep.subr.mxu0 0.0
    %963 = vmatpush1.msra.mxu0 0.0
    %964 = vmatprep.subr.mxu0 0.0
    %965 = vmatpush1.msra.mxu0 0.0
    %966 = vmatprep.subr.mxu0 0.0
    %967 = vmatpush1.msra.mxu0 0.0
    %968 = vmatprep.subr.mxu0 0.0
    %969 = vmatpush1.msra.mxu0 0.0
    %970 = vmatprep.subr.mxu0 0.0
    %971 = vmatpush1.msra.mxu0 0.0
    %972 = vmatprep.subr.mxu0 0.0
    %973 = vmatpush1.msra.mxu0 0.0
    %974 = vmatprep.subr.mxu0 0.0
    %975 = vmatpush1.msra.mxu0 0.0
    %976 = vmatprep.subr.mxu0 0.0
    %977 = vmatpush1.msra.mxu0 0.0
    %978 = vmatprep.subr.mxu0 0.0
    %979 = vmatpush1.msra.mxu0 0.0
    %980 = vmatprep.subr.mxu0 0.0
    %981 = vmatpush1.msra.mxu0 0.0
    %982 = vmatprep.subr.mxu0 0.0
    %983 = vmatpush1.msra.mxu0 0.0
    %984 = vmatprep.subr.mxu0 0.0
    %985 = vmatpush1.msra.mxu0 0.0
    %986 = vmatprep.subr.mxu0 0.0
    %987 = vmatpush1.msra.mxu0 0.0
    %988 = vmatprep.subr.mxu0 0.0
    %989 = vmatpush1.msra.mxu0 0.0
    %990 = vmatprep.subr.mxu0 0.0
    %991 = vmatpush1.msra.mxu0 0.0
    %992 = vmatprep.mubr.f32.mxu0 0.0
    %993 = vmatmul.mubr.f32.gmra.mrb[0].mxu0 %v923
    %v994 = vpop.f32.mrb[0].mxu0
    %v995 = vadd.f32 %v915, %v994
    %v996 = vpop.f32.mrb[0].mxu0
    %v997 = vadd.f32 %v915, %v996
    %998 = vmatprep.mubr.f32.mxu0 0.0
    %999 = vmatmul.mubr.f32.gmra.mrb[0].mxu0 %v926
    %v1000 = vpop.f32.mrb[0].mxu0
    %v1001 = vadd.f32 %v920, %v1000
    %v1002 = vpop.f32.mrb[0].mxu0
    %v1003 = vadd.f32 %v920, %v1002
    %1004 = vdwg.mxu0
    %1005 = vmatprep.subr.mxu0 %v877
    %1006 = vmatpush1.msra.mxu0 %v876
    %1007 = vmatprep.subr.mxu0 %v881
    %1008 = vmatpush1.msra.mxu0 %v880
    %1009 = vmatprep.subr.mxu0 %v885
    %1010 = vmatpush1.msra.mxu0 %v884
    %1011 = vmatprep.subr.mxu0 %v889
    %1012 = vmatpush1.msra.mxu0 %v888
    %1013 = vmatprep.subr.mxu0 %v893
    %1014 = vmatpush1.msra.mxu0 %v892
    %1015 = vmatprep.subr.mxu0 %v897
    %1016 = vmatpush1.msra.mxu0 %v896
    %1017 = vmatprep.subr.mxu0 %v901
    %1018 = vmatpush1.msra.mxu0 %v900
    %1019 = vmatprep.subr.mxu0 %v905
    %1020 = vmatpush1.msra.mxu0 %v904
    %1021 = vmatprep.subr.mxu0 %v909
    %1022 = vmatpush1.msra.mxu0 %v908
    %1023 = vmatprep.subr.mxu0 0.0
    %1024 = vmatpush1.msra.mxu0 0.0
    %1025 = vmatprep.subr.mxu0 0.0
    %1026 = vmatpush1.msra.mxu0 0.0
    %1027 = vmatprep.subr.mxu0 0.0
    %1028 = vmatpush1.msra.mxu0 0.0
    %1029 = vmatprep.subr.mxu0 0.0
    %1030 = vmatpush1.msra.mxu0 0.0
    %1031 = vmatprep.subr.mxu0 0.0
    %1032 = vmatpush1.msra.mxu0 0.0
    %1033 = vmatprep.subr.mxu0 0.0
    %1034 = vmatpush1.msra.mxu0 0.0
    %1035 = vmatprep.subr.mxu0 0.0
    %1036 = vmatpush1.msra.mxu0 0.0
    %1037 = vmatprep.subr.mxu0 0.0
    %1038 = vmatpush1.msra.mxu0 0.0
    %1039 = vmatprep.subr.mxu0 0.0
    %1040 = vmatpush1.msra.mxu0 0.0
    %1041 = vmatprep.subr.mxu0 0.0
    %1042 = vmatpush1.msra.mxu0 0.0
    %1043 = vmatprep.subr.mxu0 0.0
    %1044 = vmatpush1.msra.mxu0 0.0
    %1045 = vmatprep.subr.mxu0 0.0
    %1046 = vmatpush1.msra.mxu0 0.0
    %1047 = vmatprep.subr.mxu0 0.0
    %1048 = vmatpush1.msra.mxu0 0.0
    %1049 = vmatprep.subr.mxu0 0.0
    %1050 = vmatpush1.msra.mxu0 0.0
    %1051 = vmatprep.subr.mxu0 0.0
    %1052 = vmatpush1.msra.mxu0 0.0
    %1053 = vmatprep.subr.mxu0 0.0
    %1054 = vmatpush1.msra.mxu0 0.0
    %1055 = vmatprep.subr.mxu0 0.0
    %1056 = vmatpush1.msra.mxu0 0.0
    %1057 = vmatprep.subr.mxu0 0.0
    %1058 = vmatpush1.msra.mxu0 0.0
    %1059 = vmatprep.subr.mxu0 0.0
    %1060 = vmatpush1.msra.mxu0 0.0
    %1061 = vmatprep.subr.mxu0 0.0
    %1062 = vmatpush1.msra.mxu0 0.0
    %1063 = vmatprep.subr.mxu0 0.0
    %1064 = vmatpush1.msra.mxu0 0.0
    %1065 = vmatprep.subr.mxu0 0.0
    %1066 = vmatpush1.msra.mxu0 0.0
    %1067 = vmatprep.subr.mxu0 0.0
    %1068 = vmatpush1.msra.mxu0 0.0
    %1069 = vmatprep.mubr.f32.mxu0 0.0
    %1070 = vmatmul.mubr.f32.gmra.mrb[0].mxu0 %v923
    %v1071 = vpop.f32.mrb[0].mxu0
    %v1072 = vadd.f32 %v915, %v1071
    %v1073 = vpop.f32.mrb[0].mxu0
    %v1074 = vadd.f32 %v915, %v1073
    %1075 = vmatprep.mubr.f32.mxu0 0.0
    %1076 = vmatmul.mubr.f32.gmra.mrb[0].mxu0 %v926
    %v1077 = vpop.f32.mrb[0].mxu0
    %v1078 = vadd.f32 %v920, %v1077
    %v1079 = vpop.f32.mrb[0].mxu0
    %v1080 = vadd.f32 %v920, %v1079
    %1081 = vdwg.mxu0
    %v1082 = vmax.f32 %v995, 0.0
    %v1083 = vmax.f32 %v997, 0.0
    %v1084 = vmax.f32 %v1072, 0.0
    %v1085 = vmax.f32 %v1074, 0.0
    %v1086 = vmax.f32 %v1001, 0.0
    %v1087 = vmax.f32 %v1003, 0.0
    %v1088 = vmax.f32 %v1078, 0.0
    %v1089 = vmax.f32 %v1080, 0.0
    %v1090 = vmul.f32 %v700, %v1082
    %v1091 = vmul.f32 %v701, %v1083
    %v1092 = vmul.f32 %v702, %v1084
    %v1093 = vmul.f32 %v703, %v1085
    %1094 = vrot.lane.b32.xlu0 %v1090, 17
    %v1095 = vpop.permute.xlu0 %1094
    %1096 = vrot.lane.b32.xlu0 %v1091, 17
    %v1097 = vpop.permute.xlu0 %1096
    %1098 = vrot.lane.b32.xlu0 %v1092, 17
    %v1099 = vpop.permute.xlu0 %1098
    %1100 = vrot.lane.b32.xlu0 %v1093, 17
    %v1101 = vpop.permute.xlu0 %1100
    %v1102 = vsel %vm100, %v1099, %v1101
    %v1103 = vsel %vm100, %v1097, %v1099
    %v1104 = vsel %vm100, %v1095, %v1097
    %v1105 = vsel %vm100, %v1101, %v1095
    %v1106 = vsel %vm123, %v1105, 0.0
    %v1107 = vsel %vm124, %v1104, 0.0
    %v1108 = vsel %vm125, %v1103, 0.0
    %v1109 = vsel %vm126, %v1102, 0.0
    %1110 = vst [vmem:[#allocation2] sm:$0xff] %v1106
    %1111 = vst [vmem:[#allocation2 + $0x8] sm:$0xff] %v1107
    %1112 = vst [vmem:[#allocation2 + $0x10] sm:$0xff] %v1108
    %1113 = vst [vmem:[#allocation2 + $0x18] sm:$0xff] %v1109
    %1114 = vrot.lane.b32.xlu0 %v1090, 16
    %v1115 = vpop.permute.xlu0 %1114
    %1116 = vrot.lane.b32.xlu0 %v1091, 16
    %v1117 = vpop.permute.xlu0 %1116
    %1118 = vrot.lane.b32.xlu0 %v1092, 16
    %v1119 = vpop.permute.xlu0 %1118
    %1120 = vrot.lane.b32.xlu0 %v1093, 16
    %v1121 = vpop.permute.xlu0 %1120
    %v1122 = vsel %vm143, %v1119, %v1121
    %v1123 = vsel %vm143, %v1117, %v1119
    %v1124 = vsel %vm143, %v1115, %v1117
    %v1125 = vsel %vm143, %v1121, %v1115
    %v1126 = vsel %vm165, %v1125, 0.0
    %v1127 = vsel %vm166, %v1124, 0.0
    %v1128 = vsel %vm167, %v1123, 0.0
    %v1129 = vsel %vm168, %v1122, 0.0
    %1130 = vst [vmem:[#allocation2 + $0x20] sm:$0xff] %v1126
    %1131 = vst [vmem:[#allocation2 + $0x28] sm:$0xff] %v1127
    %1132 = vst [vmem:[#allocation2 + $0x30] sm:$0xff] %v1128
    %1133 = vst [vmem:[#allocation2 + $0x38] sm:$0xff] %v1129
    %1134 = vrot.lane.b32.xlu0 %v1090, 15
    %v1135 = vpop.permute.xlu0 %1134
    %1136 = vrot.lane.b32.xlu0 %v1091, 15
    %v1137 = vpop.permute.xlu0 %1136
    %1138 = vrot.lane.b32.xlu0 %v1092, 15
    %v1139 = vpop.permute.xlu0 %1138
    %1140 = vrot.lane.b32.xlu0 %v1093, 15
    %v1141 = vpop.permute.xlu0 %1140
    %v1142 = vsel %vm185, %v1139, %v1141
    %v1143 = vsel %vm185, %v1137, %v1139
    %v1144 = vsel %vm185, %v1135, %v1137
    %v1145 = vsel %vm185, %v1141, %v1135
    %v1146 = vsel %vm208, %v1145, 0.0
    %v1147 = vsel %vm209, %v1144, 0.0
    %v1148 = vsel %vm210, %v1143, 0.0
    %v1149 = vsel %vm211, %v1142, 0.0
    %1150 = vst [vmem:[#allocation2 + $0x40] sm:$0xff] %v1146
    %1151 = vst [vmem:[#allocation2 + $0x48] sm:$0xff] %v1147
    %1152 = vst [vmem:[#allocation2 + $0x50] sm:$0xff] %v1148
    %1153 = vst [vmem:[#allocation2 + $0x58] sm:$0xff] %v1149
    %1154 = vrot.lane.b32.xlu0 %v1090, 1
    %v1155 = vpop.permute.xlu0 %1154
    %1156 = vrot.lane.b32.xlu0 %v1091, 1
    %v1157 = vpop.permute.xlu0 %1156
    %1158 = vrot.lane.b32.xlu0 %v1092, 1
    %v1159 = vpop.permute.xlu0 %1158
    %1160 = vrot.lane.b32.xlu0 %v1093, 1
    %v1161 = vpop.permute.xlu0 %1160
    %v1162 = vsel %vm228, %v1159, %v1161
    %v1163 = vsel %vm228, %v1157, %v1159
    %v1164 = vsel %vm228, %v1155, %v1157
    %v1165 = vsel %vm228, %v1161, %v1155
    %v1166 = vsel %vm250, %v1165, 0.0
    %v1167 = vsel %vm251, %v1164, 0.0
    %v1168 = vsel %vm252, %v1163, 0.0
    %v1169 = vsel %vm253, %v1162, 0.0
    %1170 = vst [vmem:[#allocation2 + $0x60] sm:$0xff] %v1166
    %1171 = vst [vmem:[#allocation2 + $0x68] sm:$0xff] %v1167
    %1172 = vst [vmem:[#allocation2 + $0x70] sm:$0xff] %v1168
    %1173 = vst [vmem:[#allocation2 + $0x78] sm:$0xff] %v1169
    %1174 = vst [vmem:[#allocation2 + $0x80] sm:$0xff] %v1090
    %1175 = vst [vmem:[#allocation2 + $0x88] sm:$0xff] %v1091
    %1176 = vst [vmem:[#allocation2 + $0x90] sm:$0xff] %v1092
    %1177 = vst [vmem:[#allocation2 + $0x98] sm:$0xff] %v1093
    %1178 = vrot.lane.b32.xlu0 %v1090, 127
    %v1179 = vpop.permute.xlu0 %1178
    %1180 = vrot.lane.b32.xlu0 %v1091, 127
    %v1181 = vpop.permute.xlu0 %1180
    %1182 = vrot.lane.b32.xlu0 %v1092, 127
    %v1183 = vpop.permute.xlu0 %1182
    %1184 = vrot.lane.b32.xlu0 %v1093, 127
    %v1185 = vpop.permute.xlu0 %1184
    %v1186 = vsel %vm274, %v1183, %v1185
    %v1187 = vsel %vm274, %v1181, %v1183
    %v1188 = vsel %vm274, %v1179, %v1181
    %v1189 = vsel %vm274, %v1185, %v1179
    %v1190 = vsel %vm296, %v1188, 0.0
    %v1191 = vsel %vm297, %v1187, 0.0
    %v1192 = vsel %vm298, %v1186, 0.0
    %v1193 = vsel %vm299, %v1189, 0.0
    %1194 = vst [vmem:[#allocation2 + $0xa0] sm:$0xff] %v1190
    %1195 = vst [vmem:[#allocation2 + $0xa8] sm:$0xff] %v1191
    %1196 = vst [vmem:[#allocation2 + $0xb0] sm:$0xff] %v1192
    %1197 = vst [vmem:[#allocation2 + $0xb8] sm:$0xff] %v1193
    %1198 = vrot.lane.b32.xlu0 %v1090, 113
    %v1199 = vpop.permute.xlu0 %1198
    %1200 = vrot.lane.b32.xlu0 %v1091, 113
    %v1201 = vpop.permute.xlu0 %1200
    %1202 = vrot.lane.b32.xlu0 %v1092, 113
    %v1203 = vpop.permute.xlu0 %1202
    %1204 = vrot.lane.b32.xlu0 %v1093, 113
    %v1205 = vpop.permute.xlu0 %1204
    %v1206 = vsel %vm316, %v1203, %v1205
    %v1207 = vsel %vm316, %v1201, %v1203
    %v1208 = vsel %vm316, %v1199, %v1201
    %v1209 = vsel %vm316, %v1205, %v1199
    %v1210 = vsel %vm339, %v1208, 0.0
    %v1211 = vsel %vm340, %v1207, 0.0
    %v1212 = vsel %vm341, %v1206, 0.0
    %v1213 = vsel %vm342, %v1209, 0.0
    %1214 = vst [vmem:[#allocation2 + $0xc0] sm:$0xff] %v1210
    %1215 = vst [vmem:[#allocation2 + $0xc8] sm:$0xff] %v1211
    %1216 = vst [vmem:[#allocation2 + $0xd0] sm:$0xff] %v1212
    %1217 = vst [vmem:[#allocation2 + $0xd8] sm:$0xff] %v1213
    %1218 = vrot.lane.b32.xlu0 %v1090, 112
    %v1219 = vpop.permute.xlu0 %1218
    %1220 = vrot.lane.b32.xlu0 %v1091, 112
    %v1221 = vpop.permute.xlu0 %1220
    %1222 = vrot.lane.b32.xlu0 %v1092, 112
    %v1223 = vpop.permute.xlu0 %1222
    %1224 = vrot.lane.b32.xlu0 %v1093, 112
    %v1225 = vpop.permute.xlu0 %1224
    %v1226 = vsel %vm359, %v1223, %v1225
    %v1227 = vsel %vm359, %v1221, %v1223
    %v1228 = vsel %vm359, %v1219, %v1221
    %v1229 = vsel %vm359, %v1225, %v1219
    %v1230 = vsel %vm381, %v1228, 0.0
    %v1231 = vsel %vm382, %v1227, 0.0
    %v1232 = vsel %vm383, %v1226, 0.0
    %v1233 = vsel %vm384, %v1229, 0.0
    %1234 = vst [vmem:[#allocation2 + $0xe0] sm:$0xff] %v1230
    %1235 = vst [vmem:[#allocation2 + $0xe8] sm:$0xff] %v1231
    %1236 = vst [vmem:[#allocation2 + $0xf0] sm:$0xff] %v1232
    %1237 = vst [vmem:[#allocation2 + $0xf8] sm:$0xff] %v1233
    %1238 = vrot.lane.b32.xlu0 %v1090, 111
    %v1239 = vpop.permute.xlu0 %1238
    %1240 = vrot.lane.b32.xlu0 %v1091, 111
    %v1241 = vpop.permute.xlu0 %1240
    %1242 = vrot.lane.b32.xlu0 %v1092, 111
    %v1243 = vpop.permute.xlu0 %1242
    %1244 = vrot.lane.b32.xlu0 %v1093, 111
    %v1245 = vpop.permute.xlu0 %1244
    %v1246 = vsel %vm401, %v1243, %v1245
    %v1247 = vsel %vm401, %v1241, %v1243
    %v1248 = vsel %vm401, %v1239, %v1241
    %v1249 = vsel %vm401, %v1245, %v1239
    %v1250 = vsel %vm424, %v1248, 0.0
    %v1251 = vsel %vm425, %v1247, 0.0
    %v1252 = vsel %vm426, %v1246, 0.0
    %v1253 = vsel %vm427, %v1249, 0.0
    %1254 = vst [vmem:[#allocation2 + $0x100] sm:$0xff] %v1250
    %1255 = vst [vmem:[#allocation2 + $0x108] sm:$0xff] %v1251
    %1256 = vst [vmem:[#allocation2 + $0x110] sm:$0xff] %v1252
    %1257 = vst [vmem:[#allocation2 + $0x118] sm:$0xff] %v1253
    %v1258 = vld [vmem:[%s8] sm:$0xff]
    %v1259 = vld [vmem:[#allocation2] sm:$0xff]
    %v1260 = vld [vmem:[#allocation2 + $0x8] sm:$0xff]
    %v1261 = vld [vmem:[#allocation2 + $0x10] sm:$0xff]
    %v1262 = vld [vmem:[#allocation2 + $0x18] sm:$0xff]
    %v1263 = vld [vmem:[#allocation2 + $0x20] sm:$0xff]
    %v1264 = vld [vmem:[#allocation2 + $0x28] sm:$0xff]
    %v1265 = vld [vmem:[#allocation2 + $0x30] sm:$0xff]
    %v1266 = vld [vmem:[#allocation2 + $0x38] sm:$0xff]
    %v1267 = vld [vmem:[#allocation2 + $0x40] sm:$0xff]
    %v1268 = vld [vmem:[#allocation2 + $0x48] sm:$0xff]
    %v1269 = vld [vmem:[#allocation2 + $0x50] sm:$0xff]
    %v1270 = vld [vmem:[#allocation2 + $0x58] sm:$0xff]
    %v1271 = vld [vmem:[#allocation2 + $0x60] sm:$0xff]
    %v1272 = vld [vmem:[#allocation2 + $0x68] sm:$0xff]
    %v1273 = vld [vmem:[#allocation2 + $0x70] sm:$0xff]
    %v1274 = vld [vmem:[#allocation2 + $0x78] sm:$0xff]
    %v1275 = vld [vmem:[#allocation2 + $0x80] sm:$0xff]
    %v1276 = vld [vmem:[#allocation2 + $0x88] sm:$0xff]
    %v1277 = vld [vmem:[#allocation2 + $0x90] sm:$0xff]
    %v1278 = vld [vmem:[#allocation2 + $0x98] sm:$0xff]
    %v1279 = vld [vmem:[#allocation2 + $0xa0] sm:$0xff]
    %v1280 = vld [vmem:[#allocation2 + $0xa8] sm:$0xff]
    %v1281 = vld [vmem:[#allocation2 + $0xb0] sm:$0xff]
    %v1282 = vld [vmem:[#allocation2 + $0xb8] sm:$0xff]
    %v1283 = vld [vmem:[#allocation2 + $0xc0] sm:$0xff]
    %v1284 = vld [vmem:[#allocation2 + $0xc8] sm:$0xff]
    %v1285 = vld [vmem:[#allocation2 + $0xd0] sm:$0xff]
    %v1286 = vld [vmem:[#allocation2 + $0xd8] sm:$0xff]
    %v1287 = vld [vmem:[#allocation2 + $0xe0] sm:$0xff]
    %v1288 = vld [vmem:[#allocation2 + $0xe8] sm:$0xff]
    %v1289 = vld [vmem:[#allocation2 + $0xf0] sm:$0xff]
    %v1290 = vld [vmem:[#allocation2 + $0xf8] sm:$0xff]
    %v1291 = vld [vmem:[#allocation2 + $0x100] sm:$0xff]
    %v1292 = vld [vmem:[#allocation2 + $0x108] sm:$0xff]
    %v1293 = vld [vmem:[#allocation2 + $0x110] sm:$0xff]
    %v1294 = vld [vmem:[#allocation2 + $0x118] sm:$0xff]
    %v1295 = vld [vmem:[%s9] sm:$0xff]
    %1297 = vset.pattern.permute.xlu0 0
    %1298 = vperm.xlu0 %1297, %v1295
    %v1299 = vpop.permute.xlu0 %1298
    %v1302 = vsel %vm479, %v1258, 0
    %1304 = vmatprep.subr.mxu0 %v1260
    %1305 = vmatpush1.msra.mxu0 %v1259
    %1306 = vmatprep.subr.mxu0 %v1264
    %1307 = vmatpush1.msra.mxu0 %v1263
    %1308 = vmatprep.subr.mxu0 %v1268
    %1309 = vmatpush1.msra.mxu0 %v1267
    %1310 = vmatprep.subr.mxu0 %v1272
    %1311 = vmatpush1.msra.mxu0 %v1271
    %1312 = vmatprep.subr.mxu0 %v1276
    %1313 = vmatpush1.msra.mxu0 %v1275
    %1314 = vmatprep.subr.mxu0 %v1280
    %1315 = vmatpush1.msra.mxu0 %v1279
    %1316 = vmatprep.subr.mxu0 %v1284
    %1317 = vmatpush1.msra.mxu0 %v1283
    %1318 = vmatprep.subr.mxu0 %v1288
    %1319 = vmatpush1.msra.mxu0 %v1287
    %1320 = vmatprep.subr.mxu0 %v1292
    %1321 = vmatpush1.msra.mxu0 %v1291
    %1322 = vmatprep.subr.mxu0 0.0
    %1323 = vmatpush1.msra.mxu0 0.0
    %1324 = vmatprep.subr.mxu0 0.0
    %1325 = vmatpush1.msra.mxu0 0.0
    %1326 = vmatprep.subr.mxu0 0.0
    %1327 = vmatpush1.msra.mxu0 0.0
    %1328 = vmatprep.subr.mxu0 0.0
    %1329 = vmatpush1.msra.mxu0 0.0
    %1330 = vmatprep.subr.mxu0 0.0
    %1331 = vmatpush1.msra.mxu0 0.0
    %1332 = vmatprep.subr.mxu0 0.0
    %1333 = vmatpush1.msra.mxu0 0.0
    %1334 = vmatprep.subr.mxu0 0.0
    %1335 = vmatpush1.msra.mxu0 0.0
    %1336 = vmatprep.subr.mxu0 0.0
    %1337 = vmatpush1.msra.mxu0 0.0
    %1338 = vmatprep.subr.mxu0 0.0
    %1339 = vmatpush1.msra.mxu0 0.0
    %1340 = vmatprep.subr.mxu0 0.0
    %1341 = vmatpush1.msra.mxu0 0.0
    %1342 = vmatprep.subr.mxu0 0.0
    %1343 = vmatpush1.msra.mxu0 0.0
    %1344 = vmatprep.subr.mxu0 0.0
    %1345 = vmatpush1.msra.mxu0 0.0
    %1346 = vmatprep.subr.mxu0 0.0
    %1347 = vmatpush1.msra.mxu0 0.0
    %1348 = vmatprep.subr.mxu0 0.0
    %1349 = vmatpush1.msra.mxu0 0.0
    %1350 = vmatprep.subr.mxu0 0.0
    %1351 = vmatpush1.msra.mxu0 0.0
    %1352 = vmatprep.subr.mxu0 0.0
    %1353 = vmatpush1.msra.mxu0 0.0
    %1354 = vmatprep.subr.mxu0 0.0
    %1355 = vmatpush1.msra.mxu0 0.0
    %1356 = vmatprep.subr.mxu0 0.0
    %1357 = vmatpush1.msra.mxu0 0.0
    %1358 = vmatprep.subr.mxu0 0.0
    %1359 = vmatpush1.msra.mxu0 0.0
    %1360 = vmatprep.subr.mxu0 0.0
    %1361 = vmatpush1.msra.mxu0 0.0
    %1362 = vmatprep.subr.mxu0 0.0
    %1363 = vmatpush1.msra.mxu0 0.0
    %1364 = vmatprep.subr.mxu0 0.0
    %1365 = vmatpush1.msra.mxu0 0.0
    %1366 = vmatprep.subr.mxu0 0.0
    %1367 = vmatpush1.msra.mxu0 0.0
    %1368 = vmatprep.mubr.f32.mxu0 0.0
    %1369 = vmatmul.mubr.f32.gmra.mrb[0].mxu0 %v1302
    %v1370 = vpop.f32.mrb[0].mxu0
    %v1371 = vadd.f32 %v1299, %v1370
    %v1372 = vpop.f32.mrb[0].mxu0
    %v1373 = vadd.f32 %v1299, %v1372
    %1374 = vdwg.mxu0
    %1375 = vmatprep.subr.mxu0 %v1262
    %1376 = vmatpush1.msra.mxu0 %v1261
    %1377 = vmatprep.subr.mxu0 %v1266
    %1378 = vmatpush1.msra.mxu0 %v1265
    %1379 = vmatprep.subr.mxu0 %v1270
    %1380 = vmatpush1.msra.mxu0 %v1269
    %1381 = vmatprep.subr.mxu0 %v1274
    %1382 = vmatpush1.msra.mxu0 %v1273
    %1383 = vmatprep.subr.mxu0 %v1278
    %1384 = vmatpush1.msra.mxu0 %v1277
    %1385 = vmatprep.subr.mxu0 %v1282
    %1386 = vmatpush1.msra.mxu0 %v1281
    %1387 = vmatprep.subr.mxu0 %v1286
    %1388 = vmatpush1.msra.mxu0 %v1285
    %1389 = vmatprep.subr.mxu0 %v1290
    %1390 = vmatpush1.msra.mxu0 %v1289
    %1391 = vmatprep.subr.mxu0 %v1294
    %1392 = vmatpush1.msra.mxu0 %v1293
    %1393 = vmatprep.subr.mxu0 0.0
    %1394 = vmatpush1.msra.mxu0 0.0
    %1395 = vmatprep.subr.mxu0 0.0
    %1396 = vmatpush1.msra.mxu0 0.0
    %1397 = vmatprep.subr.mxu0 0.0
    %1398 = vmatpush1.msra.mxu0 0.0
    %1399 = vmatprep.subr.mxu0 0.0
    %1400 = vmatpush1.msra.mxu0 0.0
    %1401 = vmatprep.subr.mxu0 0.0
    %1402 = vmatpush1.msra.mxu0 0.0
    %1403 = vmatprep.subr.mxu0 0.0
    %1404 = vmatpush1.msra.mxu0 0.0
    %1405 = vmatprep.subr.mxu0 0.0
    %1406 = vmatpush1.msra.mxu0 0.0
    %1407 = vmatprep.subr.mxu0 0.0
    %1408 = vmatpush1.msra.mxu0 0.0
    %1409 = vmatprep.subr.mxu0 0.0
    %1410 = vmatpush1.msra.mxu0 0.0
    %1411 = vmatprep.subr.mxu0 0.0
    %1412 = vmatpush1.msra.mxu0 0.0
    %1413 = vmatprep.subr.mxu0 0.0
    %1414 = vmatpush1.msra.mxu0 0.0
    %1415 = vmatprep.subr.mxu0 0.0
    %1416 = vmatpush1.msra.mxu0 0.0
    %1417 = vmatprep.subr.mxu0 0.0
    %1418 = vmatpush1.msra.mxu0 0.0
    %1419 = vmatprep.subr.mxu0 0.0
    %1420 = vmatpush1.msra.mxu0 0.0
    %1421 = vmatprep.subr.mxu0 0.0
    %1422 = vmatpush1.msra.mxu0 0.0
    %1423 = vmatprep.subr.mxu0 0.0
    %1424 = vmatpush1.msra.mxu0 0.0
    %1425 = vmatprep.subr.mxu0 0.0
    %1426 = vmatpush1.msra.mxu0 0.0
    %1427 = vmatprep.subr.mxu0 0.0
    %1428 = vmatpush1.msra.mxu0 0.0
    %1429 = vmatprep.subr.mxu0 0.0
    %1430 = vmatpush1.msra.mxu0 0.0
    %1431 = vmatprep.subr.mxu0 0.0
    %1432 = vmatpush1.msra.mxu0 0.0
    %1433 = vmatprep.subr.mxu0 0.0
    %1434 = vmatpush1.msra.mxu0 0.0
    %1435 = vmatprep.subr.mxu0 0.0
    %1436 = vmatpush1.msra.mxu0 0.0
    %1437 = vmatprep.subr.mxu0 0.0
    %1438 = vmatpush1.msra.mxu0 0.0
    %1439 = vmatprep.mubr.f32.mxu0 0.0
    %1440 = vmatmul.mubr.f32.gmra.mrb[0].mxu0 %v1302
    %v1441 = vpop.f32.mrb[0].mxu0
    %v1442 = vadd.f32 %v1299, %v1441
    %v1443 = vpop.f32.mrb[0].mxu0
    %v1444 = vadd.f32 %v1299, %v1443
    %1445 = vdwg.mxu0
    %v1446 = vmax.f32 %v1371, 0.0
    %v1447 = vmax.f32 %v1373, 0.0
    %v1448 = vmax.f32 %v1442, 0.0
    %v1449 = vmax.f32 %v1444, 0.0
    %v1450 = vmul.f32 %v1086, %v1446
    %v1451 = vmul.f32 %v1087, %v1447
    %v1452 = vmul.f32 %v1088, %v1448
    %v1453 = vmul.f32 %v1089, %v1449
    %1454 = vst [vmem:[#allocation9] sm:$0xff] %v1450
    %1455 = vst [vmem:[#allocation9 + $0x8] sm:$0xff] %v1451
    %1456 = vst [vmem:[#allocation9 + $0x10] sm:$0xff] %v1452
    %1457 = vst [vmem:[#allocation9 + $0x18] sm:$0xff] %v1453
    // Predicated region
    $region62: #{tpu_custom_call.1} parent=1 // pred_check
      _
    $region63: #{tpu_custom_call.1} parent=1 // pred_check_branch
      %1459 = sbr.rel (0) target = $region65
    $region64: #{tpu_custom_call.1} parent=1 // pred_region
      %s1461 = ssub.s32 512, 512
      %1462 = vsyncadd [#allocation5], %s1461
      %s1464 = sshll.u32 [#allocation9], 4
      %s1465 = int_to_ptr.vmem [resolvable:$true] %s1464
      %1467 = dma.vmem_to_hbm [thread:$0]  %s1465, 512, %s12, [#allocation5]
    $region65: #{tpu_custom_call.1} parent=1 // pred_fallthru
      _
    // Predicated region
    $region66: #{tpu_custom_call.1} parent=1 // pred_check
      _
    $region67: #{tpu_custom_call.1} parent=1 // pred_check_branch
      %1469 = sbr.rel (0) target = $region69
    $region68: #{tpu_custom_call.1} parent=1 // pred_region
      %1470 = dma.done [#allocation5], 512
    $region69: #{tpu_custom_call.1} parent=1 // pred_fallthru
      _
    %1471 = vsyncpa [#allocation4], 1
    %1472 = vsyncpa [#allocation7], 1
    %1473 = vsyncpa [#allocation5], 1

</llo_original>
